<compile_context>
chip_gen: v7x
topology: tpu7x:2x2x1
jax: 0.10.0
libtpu: 0.0.40
codegen_flags: <defaults>
</compile_context>

<pallas_src>
import functools
import math

import jax
import jax.numpy as jnp
from jax.experimental import pallas as pl
from jax.experimental.pallas import tpu as pltpu

EPS = 1e-5


def _layernorm(v, g, b):
    mu = jnp.mean(v, axis=-1, keepdims=True)
    var = jnp.mean((v - mu) ** 2, axis=-1, keepdims=True)   # biased variance, like torch LN
    return (v - mu) * jax.lax.rsqrt(var + EPS) * g + b


# --------------------------------------------------------------------------------------
# Kernel 1: adaLN-modulated multi-head attention with flash softmax + residual
#   x1 = x + gate_msa * W_o(softmax(QK^T/sqrt(hd)) V)
# --------------------------------------------------------------------------------------
def _attn_kernel(x_ref, mod_ref, k_ref, v_ref,
                 ln1_g_ref, ln1_b_ref, w_q_ref, b_q_ref, w_o_ref, b_o_ref,
                 o_ref,
                 q_scr, m_scr, l_scr, acc_scr,
                 *, num_heads, mxu_dtype):
    kv = pl.program_id(2)
    tS = x_ref.shape[1]
    D = x_ref.shape[2]
    hd = D // num_heads

    mod = mod_ref[0]                      # (6, D) f32, precomputed adaLN modulation
    shift_msa = mod[0:1, :]
    scale_msa = mod[1:2, :]
    gate_msa = mod[2:3, :]

    # ---- once per query tile: Q projection + flash-softmax state init ----
    @pl.when(kv == 0)
    def _():
        nx1 = _layernorm(x_ref[0], ln1_g_ref[...], ln1_b_ref[...])
        nx1 = nx1 * (1.0 + scale_msa) + shift_msa
        nx1_c = nx1.astype(mxu_dtype)
        inv_sqrt = 1.0 / math.sqrt(hd)
        for h in range(num_heads):        # per-head (tS, D) @ (D, hd); full-width stores
            q_h = jnp.dot(nx1_c, w_q_ref[h],
                          preferred_element_type=jnp.float32) + b_q_ref[h]
            q_scr[h] = (q_h * inv_sqrt).astype(mxu_dtype)
        m_scr[...] = jnp.full_like(m_scr, -jnp.inf)
        l_scr[...] = jnp.zeros_like(l_scr)
        acc_scr[...] = jnp.zeros_like(acc_scr)

    # ---- online softmax over this K/V chunk ----
    s = jnp.einsum('hqe,hke->hqk', q_scr[...], k_ref[0],
                   preferred_element_type=jnp.float32)           # (nh, tS, tK) f32
    m_new = jnp.maximum(m_scr[...], jnp.max(s, axis=-1, keepdims=True))
    alpha = jnp.exp(m_scr[...] - m_new)
    p = jnp.exp(s - m_new)
    l_scr[...] = alpha * l_scr[...] + jnp.sum(p, axis=-1, keepdims=True)
    acc_scr[...] = alpha * acc_scr[...] + jnp.einsum(
        'hqk,hke->hqe', p.astype(mxu_dtype), v_ref[0],
        preferred_element_type=jnp.float32)                      # (nh, tS, hd) f32
    m_scr[...] = m_new

    # ---- finalize: normalize, output projection (per-head weights), residual ----
    @pl.when(kv == pl.num_programs(2) - 1)
    def _():
        attn = acc_scr[...] * pl.reciprocal(l_scr[...], approx=True)   # (nh, tS, hd)
        attn_o = jnp.zeros((tS, D), jnp.float32)
        for h in range(num_heads):        # per-head (tS, hd) @ (hd, D), accumulated in f32
            attn_o = attn_o + jnp.dot(attn[h].astype(mxu_dtype), w_o_ref[h],
                                      preferred_element_type=jnp.float32)
        attn_o = attn_o + b_o_ref[...]
        o_ref[0] = (x_ref[0] + gate_msa * attn_o).astype(o_ref.dtype)


# --------------------------------------------------------------------------------------
# Kernel 2: adaLN-modulated gated MLP (SwiGLU) + residual, hidden dim streamed in chunks
#   out = x1 + gate_mlp * W3(silu(W1 nx) * (W2 nx))
# --------------------------------------------------------------------------------------
def _mlp_kernel(x1_ref, mod_ref, ln2_g_ref, ln2_b_ref, b3_ref,
                w1_ref, b1_ref, w2_ref, b2_ref, w3_ref,
                o_ref,
                nx2_scr, acc_scr,
                *, mxu_dtype):
    hc = pl.program_id(2)

    mod = mod_ref[0]
    shift_mlp = mod[3:4, :]
    scale_mlp = mod[4:5, :]
    gate_mlp = mod[5:6, :]

    @pl.when(hc == 0)
    def _():
        nx2 = _layernorm(x1_ref[0], ln2_g_ref[...], ln2_b_ref[...])
        nx2 = nx2 * (1.0 + scale_mlp) + shift_mlp
        nx2_scr[...] = nx2.astype(mxu_dtype)
        acc_scr[...] = jnp.zeros_like(acc_scr)

    nx2_c = nx2_scr[...]
    h1 = jnp.dot(nx2_c, w1_ref[...], preferred_element_type=jnp.float32) + b1_ref[...]
    h2 = jnp.dot(nx2_c, w2_ref[...], preferred_element_type=jnp.float32) + b2_ref[...]
    hidden = (h1 * jax.nn.sigmoid(h1)) * h2                      # SwiGLU, f32
    acc_scr[...] += jnp.dot(hidden.astype(mxu_dtype), w3_ref[...],
                            preferred_element_type=jnp.float32)

    @pl.when(hc == pl.num_programs(2) - 1)
    def _():
        ffn = acc_scr[...] + b3_ref[...]
        o_ref[0] = (x1_ref[0] + gate_mlp * ffn).astype(o_ref.dtype)


# --------------------------------------------------------------------------------------
# Wrapper
# --------------------------------------------------------------------------------------
def _vmem_limit_bytes():
    try:
        cap = int(pltpu.get_tpu_info().vmem_capacity_bytes)
    except Exception:  # device query unavailable (e.g. interpret mode): conservative cap
        cap = 64 * 2 ** 20
    return int(0.9 * cap)


def adaformer_block(x, cond, params, *, num_heads,
                    seq_tile=None, kv_tile=None, hidden_tile=None,
                    mxu_dtype=jnp.bfloat16):
    """x: (B, S, D) f32, cond: (B, D) f32.  Returns a lazy (B, S, D) f32 array."""
    B, S, D = x.shape
    assert D % num_heads == 0
    hd = D // num_heads
    H = params["w1"].shape[1]
    f32 = jnp.float32

    tS = seq_tile if seq_tile is not None else min(S, 128)
    tK = kv_tile if kv_tile is not None else min(S, 512)
    tH = hidden_tile if hidden_tile is not None else (512 if H >= 512 else H)
    assert S % tS == 0 and (tS % 8 == 0 or tS == S)
    assert S % tK == 0 and (tK % 8 == 0 or tK == S)
    assert H % tH == 0 and (tH % 128 == 0 or tH == H)
    nQ, nKV, nH = S // tS, S // tK, H // tH

    # ---- hoisted parameters (one-time repack / bf16 cast) ----
    ln1_g = params["ln1_g"].astype(f32)
    ln1_b = params["ln1_b"].astype(f32)
    ln2_g = params["ln2_g"].astype(f32)
    ln2_b = params["ln2_b"].astype(f32)
    w_q_h = params["w_qkv"][:, :D].reshape(D, num_heads, hd).transpose(1, 0, 2).astype(mxu_dtype)
    b_q_h = params["b_qkv"][:, :D].reshape(1, num_heads, hd).transpose(1, 0, 2).astype(f32)
    w_o_h = params["w_o"].reshape(num_heads, hd, D).astype(mxu_dtype)
    b_o = params["b_o"].astype(f32)
    w1 = params["w1"].astype(mxu_dtype)
    b1 = params["b1"].astype(f32)
    w2 = params["w2"].astype(mxu_dtype)
    b2 = params["b2"].astype(f32)
    w3 = params["w3"].astype(mxu_dtype)
    b3 = params["b3"].astype(f32)

    # ---- hoisted out of the kernels: adaLN modulation (one batched XLA matmul) ----
    c = cond.astype(f32)
    mod = (jnp.dot(jax.nn.silu(c), params["w_ada"].astype(f32))
           + params["b_ada"].astype(f32)).reshape(B, 6, D)

    # ---- hoisted out of the kernels: K/V projection for the full sequence (XLA) ----
    shift_msa = mod[:, 0][:, None, :]
    scale_msa = mod[:, 1][:, None, :]
    nx1 = _layernorm(x.astype(f32), ln1_g, ln1_b) * (1.0 + scale_msa) + shift_msa
    w_kv = params["w_qkv"][:, D:].astype(mxu_dtype)
    b_kv = params["b_qkv"][:, D:].astype(f32)
    kvp = jnp.dot(nx1.astype(mxu_dtype), w_kv, preferred_element_type=f32) + b_kv
    k_heads = kvp[..., :D].reshape(B, S, num_heads, hd).transpose(0, 2, 1, 3).astype(mxu_dtype)
    v_heads = kvp[..., D:].reshape(B, S, num_heads, hd).transpose(0, 2, 1, 3).astype(mxu_dtype)

    vmem_limit = _vmem_limit_bytes()

    def _const(a):
        nd = a.ndim
        return pl.BlockSpec(a.shape, lambda b, q, c, _nd=nd: (0,) * _nd)

    # ---- attention kernel call ----
    x1 = pl.pallas_call(
        functools.partial(_attn_kernel, num_heads=num_heads, mxu_dtype=mxu_dtype),
        out_shape=jax.ShapeDtypeStruct((B, S, D), f32),
        grid=(B, nQ, nKV),
        in_specs=[
            pl.BlockSpec((1, tS, D), lambda b, q, c: (b, q, 0)),                 # x tile
            pl.BlockSpec((1, 6, D), lambda b, q, c: (b, 0, 0)),                  # adaLN mod
            pl.BlockSpec((1, num_heads, tK, hd), lambda b, q, c: (b, 0, c, 0)),  # K chunk
            pl.BlockSpec((1, num_heads, tK, hd), lambda b, q, c: (b, 0, c, 0)),  # V chunk
            _const(ln1_g), _const(ln1_b),
            _const(w_q_h), _const(b_q_h), _const(w_o_h), _const(b_o),
        ],
        out_specs=pl.BlockSpec((1, tS, D), lambda b, q, c: (b, q, 0)),
        scratch_shapes=[
            pltpu.VMEM((num_heads, tS, hd), mxu_dtype),   # Q tile (head-major)
            pltpu.VMEM((num_heads, tS, 1), f32),          # running max
            pltpu.VMEM((num_heads, tS, 1), f32),          # running sum
            pltpu.VMEM((num_heads, tS, hd), f32),         # output accumulator
        ],
        compiler_params=pltpu.CompilerParams(
            dimension_semantics=("parallel", "parallel", "arbitrary"),
            vmem_limit_bytes=vmem_limit),
    )(x, mod, k_heads, v_heads, ln1_g, ln1_b, w_q_h, b_q_h, w_o_h, b_o)

    # ---- gated-MLP kernel call (hidden dimension streamed in tH chunks) ----
    out = pl.pallas_call(
        functools.partial(_mlp_kernel, mxu_dtype=mxu_dtype),
        out_shape=jax.ShapeDtypeStruct((B, S, D), f32),
        grid=(B, nQ, nH),
        in_specs=[
            pl.BlockSpec((1, tS, D), lambda b, q, c: (b, q, 0)),   # x1 tile
            pl.BlockSpec((1, 6, D), lambda b, q, c: (b, 0, 0)),    # adaLN mod
            _const(ln2_g), _const(ln2_b), _const(b3),
            pl.BlockSpec((D, tH), lambda b, q, c: (0, c)),         # w1 column chunk
            pl.BlockSpec((1, tH), lambda b, q, c: (0, c)),         # b1 chunk
            pl.BlockSpec((D, tH), lambda b, q, c: (0, c)),         # w2 column chunk
            pl.BlockSpec((1, tH), lambda b, q, c: (0, c)),         # b2 chunk
            pl.BlockSpec((tH, D), lambda b, q, c: (c, 0)),         # w3 row chunk
        ],
        out_specs=pl.BlockSpec((1, tS, D), lambda b, q, c: (b, q, 0)),
        scratch_shapes=[
            pltpu.VMEM((tS, D), mxu_dtype),   # modulated LN2 activations (reused per chunk)
            pltpu.VMEM((tS, D), f32),         # FFN accumulator
        ],
        compiler_params=pltpu.CompilerParams(
            dimension_semantics=("parallel", "parallel", "arbitrary"),
            vmem_limit_bytes=vmem_limit),
    )(x1, mod, ln2_g, ln2_b, b3, w1, b1, w2, b2, w3)

    return out   # lazy; caller decides when to block


# --------------------------------------------------------------------------------------
# Pure-JAX f32 reference (same math) for the correctness check
# --------------------------------------------------------------------------------------
def adaformer_reference(x, cond, params, *, num_heads):
    B, S, D = x.shape
    hd = D // num_heads

    def ln(v, g, b):
        mu = jnp.mean(v, -1, keepdims=True)
        var = jnp.mean((v - mu) ** 2, -1, keepdims=True)
        return (v - mu) * jax.lax.rsqrt(var + EPS) * g + b

    c_silu = cond * jax.nn.sigmoid(cond)
    ada = c_silu @ params["w_ada"] + params["b_ada"]            # (B, 6D)
    sm, cm, gm, sf, cf, gf = jnp.split(ada, 6, axis=1)

    x0 = x
    nx = ln(x, params["ln1_g"], params["ln1_b"]) * (1 + cm[:, None, :]) + sm[:, None, :]
    qkv = nx @ params["w_qkv"] + params["b_qkv"]
    q, k, v = jnp.split(qkv, 3, axis=-1)
    q = q.reshape(B, S, num_heads, hd).transpose(0, 2, 1, 3)
    k = k.reshape(B, S, num_heads, hd).transpose(0, 2, 1, 3)
    v = v.reshape(B, S, num_heads, hd).transpose(0, 2, 1, 3)
    s = jnp.einsum("bhqd,bhkd->bhqk", q, k) / (hd ** 0.5)
    p = jax.nn.softmax(s, axis=-1)
    attn = jnp.einsum("bhqk,bhkd->bhqd", p, v).transpose(0, 2, 1, 3).reshape(B, S, D)
    attn = attn @ params["w_o"] + params["b_o"]
    x = x0 + gm[:, None, :] * attn

    x0 = x
    nx = ln(x, params["ln2_g"], params["ln2_b"]) * (1 + cf[:, None, :]) + sf[:, None, :]
    h1 = nx @ params["w1"] + params["b1"]
    h2 = nx @ params["w2"] + params["b2"]
    ffn = ((h1 * jax.nn.sigmoid(h1)) * h2) @ params["w3"] + params["b3"]
    return x0 + gf[:, None, :] * ffn


def make_params(key, d_model, mlp_hidden, scale=0.05):
    ks = jax.random.split(key, 12)
    f32 = jnp.float32
    return {
        "w_ada": jax.random.normal(ks[0], (d_model, 6 * d_model), f32) * scale,
        "b_ada": jax.random.normal(ks[1], (1, 6 * d_model), f32) * scale,
        "ln1_g": jnp.ones((1, d_model), f32),
        "ln1_b": jnp.zeros((1, d_model), f32),
        "w_qkv": jax.random.normal(ks[2], (d_model, 3 * d_model), f32) * scale,
        "b_qkv": jax.random.normal(ks[3], (1, 3 * d_model), f32) * scale,
        "w_o":   jax.random.normal(ks[4], (d_model, d_model), f32) * scale,
        "b_o":   jax.random.normal(ks[5], (1, d_model), f32) * scale,
        "ln2_g": jnp.ones((1, d_model), f32),
        "ln2_b": jnp.zeros((1, d_model), f32),
        "w1":    jax.random.normal(ks[6], (d_model, mlp_hidden), f32) * scale,
        "b1":    jax.random.normal(ks[7], (1, mlp_hidden), f32) * scale,
        "w2":    jax.random.normal(ks[8], (d_model, mlp_hidden), f32) * scale,
        "b2":    jax.random.normal(ks[9], (1, mlp_hidden), f32) * scale,
        "w3":    jax.random.normal(ks[10], (mlp_hidden, d_model), f32) * scale,
        "b3":    jax.random.normal(ks[11], (1, d_model), f32) * scale,
    }


if __name__ == "__main__":
    B, S, D = 2, 16, 32
    NUM_HEADS = 4
    MLP_HIDDEN = 256      # so the hidden-chunk grid axis is exercised (nH = 2 with tH = 128)

    key = jax.random.PRNGKey(0)
    kx, kc, kp = jax.random.split(key, 3)
    x = jax.random.normal(kx, (B, S, D), jnp.float32)
    cond = jax.random.normal(kc, (B, D), jnp.float32)
    params = make_params(kp, D, MLP_HIDDEN)

    out = adaformer_block(x, cond, params, num_heads=NUM_HEADS,
                          seq_tile=8,       # nQ  = 2
                          kv_tile=8,        # nKV = 2 (exercises the flash-softmax loop)
                          hidden_tile=128)  # nH  = 2 (exercises MLP weight streaming)
    out = jax.block_until_ready(out)

    ref = adaformer_reference(x, cond, params, num_heads=NUM_HEADS)
    assert out.shape == (B, S, D)
    max_err = float(jnp.max(jnp.abs(out - ref)))
    # bf16 MXU inputs + approx reciprocal -> slightly looser tolerance than pure f32
    assert jnp.allclose(out, ref, atol=2e-2, rtol=2e-2), (
        f"mismatch vs reference (max abs err {max_err})")

    print("KERNEL_OK")
</pallas_src>

<mosaic_0001>
module attributes {stable_mosaic.version = 11 : i64} {
  func.func @_attn_kernel(%arg0: i32, %arg1: i32, %arg2: i32, %arg3: memref<1x8x32xf32, #tpu.memory_space<vmem>>, %arg4: memref<1x6x32xf32, #tpu.memory_space<vmem>>, %arg5: memref<1x4x8x8xbf16, #tpu.memory_space<vmem>>, %arg6: memref<1x4x8x8xbf16, #tpu.memory_space<vmem>>, %arg7: memref<1x32xf32, #tpu.memory_space<vmem>>, %arg8: memref<1x32xf32, #tpu.memory_space<vmem>>, %arg9: memref<4x32x8xbf16, #tpu.memory_space<vmem>>, %arg10: memref<4x1x8xf32, #tpu.memory_space<vmem>>, %arg11: memref<4x8x32xbf16, #tpu.memory_space<vmem>>, %arg12: memref<1x32xf32, #tpu.memory_space<vmem>>, %arg13: memref<1x8x32xf32, #tpu.memory_space<vmem>>, %arg14: memref<4x8x8xbf16, #tpu.memory_space<vmem>>, %arg15: memref<4x8x1xf32, #tpu.memory_space<vmem>>, %arg16: memref<4x8x1xf32, #tpu.memory_space<vmem>>, %arg17: memref<4x8x8xf32, #tpu.memory_space<vmem>>) attributes {dimension_semantics = [#tpu.dimension_semantics<parallel>, #tpu.dimension_semantics<parallel>, #tpu.dimension_semantics<arbitrary>], iteration_bounds = array<i64: 2, 2, 2>, scalar_prefetch = 0 : i64, scratch_operands = 4 : i64, tpu.core_type = #tpu.core_type<tc>, window_params = [{transform_indices = @transform_0, window_bounds = array<i64: 1, 8, 32>}, {transform_indices = @transform_1, window_bounds = array<i64: 1, 6, 32>}, {transform_indices = @transform_2, window_bounds = array<i64: 1, 4, 8, 8>}, {transform_indices = @transform_3, window_bounds = array<i64: 1, 4, 8, 8>}, {pipeline_mode = #tpu.pipeline_mode<synchronous>, transform_indices = @transform_4, window_bounds = array<i64: 1, 32>}, {pipeline_mode = #tpu.pipeline_mode<synchronous>, transform_indices = @transform_5, window_bounds = array<i64: 1, 32>}, {pipeline_mode = #tpu.pipeline_mode<synchronous>, transform_indices = @transform_6, window_bounds = array<i64: 4, 32, 8>}, {pipeline_mode = #tpu.pipeline_mode<synchronous>, transform_indices = @transform_7, window_bounds = array<i64: 4, 1, 8>}, {pipeline_mode = #tpu.pipeline_mode<synchronous>, transform_indices = @transform_8, window_bounds = array<i64: 4, 8, 32>}, {pipeline_mode = #tpu.pipeline_mode<synchronous>, transform_indices = @transform_9, window_bounds = array<i64: 1, 32>}, {transform_indices = @transform_10, window_bounds = array<i64: 1, 8, 32>}]} {
    %c0 = arith.constant 0 : index
    %c0_0 = arith.constant 0 : index
    %c0_1 = arith.constant 0 : index
    %0 = vector.load %arg4[%c0, %c0_0, %c0_1] : memref<1x6x32xf32, #tpu.memory_space<vmem>>, vector<1x6x32xf32>
    %1 = vector.shape_cast %0 : vector<1x6x32xf32> to vector<6x32xf32>
    %2 = vector.extract_strided_slice %1 {offsets = [0, 0], sizes = [1, 32], strides = [1, 1]} : vector<6x32xf32> to vector<1x32xf32>
    %3 = vector.extract_strided_slice %1 {offsets = [1, 0], sizes = [1, 32], strides = [1, 1]} : vector<6x32xf32> to vector<1x32xf32>
    %4 = vector.extract_strided_slice %1 {offsets = [2, 0], sizes = [1, 32], strides = [1, 1]} : vector<6x32xf32> to vector<1x32xf32>
    %c0_i32 = arith.constant 0 : i32
    %5 = arith.cmpi eq, %arg2, %c0_i32 : i32
    %6 = arith.extui %5 : i1 to i32
    %c0_i32_2 = arith.constant 0 : i32
    %7 = arith.cmpi ne, %6, %c0_i32_2 : i32
    scf.if %7 {
      %c0_39 = arith.constant 0 : index
      %c0_40 = arith.constant 0 : index
      %c0_41 = arith.constant 0 : index
      %41 = vector.load %arg3[%c0_39, %c0_40, %c0_41] : memref<1x8x32xf32, #tpu.memory_space<vmem>>, vector<1x8x32xf32>
      %42 = vector.shape_cast %41 : vector<1x8x32xf32> to vector<8x32xf32>
      %c0_42 = arith.constant 0 : index
      %c0_43 = arith.constant 0 : index
      %43 = vector.load %arg7[%c0_42, %c0_43] : memref<1x32xf32, #tpu.memory_space<vmem>>, vector<1x32xf32>
      %c0_44 = arith.constant 0 : index
      %c0_45 = arith.constant 0 : index
      %44 = vector.load %arg8[%c0_44, %c0_45] : memref<1x32xf32, #tpu.memory_space<vmem>>, vector<1x32xf32>
      %cst_46 = arith.constant dense<0.000000e+00> : vector<8xf32>
      %45 = vector.multi_reduction <add>, %42, %cst_46 [1] : vector<8x32xf32> to vector<8xf32>
      %46 = vector.shape_cast %45 : vector<8xf32> to vector<8x1xf32>
      %cst_47 = arith.constant 3.200000e+01 : f32
      %47 = vector.broadcast %cst_47 : f32 to vector<8x1xf32>
      %48 = arith.divf %46, %47 : vector<8x1xf32>
      %49 = vector.broadcast %48 : vector<8x1xf32> to vector<8x32xf32>
      %50 = arith.subf %42, %49 : vector<8x32xf32>
      %51 = arith.mulf %50, %50 : vector<8x32xf32>
      %cst_48 = arith.constant dense<0.000000e+00> : vector<8xf32>
      %52 = vector.multi_reduction <add>, %51, %cst_48 [1] : vector<8x32xf32> to vector<8xf32>
      %53 = vector.shape_cast %52 : vector<8xf32> to vector<8x1xf32>
      %cst_49 = arith.constant 3.200000e+01 : f32
      %54 = vector.broadcast %cst_49 : f32 to vector<8x1xf32>
      %55 = arith.divf %53, %54 : vector<8x1xf32>
      %56 = vector.broadcast %48 : vector<8x1xf32> to vector<8x32xf32>
      %57 = arith.subf %42, %56 : vector<8x32xf32>
      %cst_50 = arith.constant 9.99999974E-6 : f32
      %58 = vector.broadcast %cst_50 : f32 to vector<8x1xf32>
      %59 = arith.addf %55, %58 : vector<8x1xf32>
      %60 = math.rsqrt %59 : vector<8x1xf32>
      %61 = vector.broadcast %60 : vector<8x1xf32> to vector<8x32xf32>
      %62 = arith.mulf %57, %61 : vector<8x32xf32>
      %63 = vector.broadcast %43 : vector<1x32xf32> to vector<8x32xf32>
      %64 = arith.mulf %62, %63 : vector<8x32xf32>
      %65 = vector.broadcast %44 : vector<1x32xf32> to vector<8x32xf32>
      %66 = arith.addf %64, %65 : vector<8x32xf32>
      %cst_51 = arith.constant 1.000000e+00 : f32
      %67 = vector.broadcast %cst_51 : f32 to vector<1x32xf32>
      %68 = arith.addf %67, %3 : vector<1x32xf32>
      %69 = vector.broadcast %68 : vector<1x32xf32> to vector<8x32xf32>
      %70 = arith.mulf %66, %69 : vector<8x32xf32>
      %71 = vector.broadcast %2 : vector<1x32xf32> to vector<8x32xf32>
      %72 = arith.addf %70, %71 : vector<8x32xf32>
      %73 = arith.truncf %72 : vector<8x32xf32> to vector<8x32xbf16>
      %c0_52 = arith.constant 0 : index
      %c0_53 = arith.constant 0 : index
      %c0_54 = arith.constant 0 : index
      %74 = vector.load %arg9[%c0_52, %c0_53, %c0_54] : memref<4x32x8xbf16, #tpu.memory_space<vmem>>, vector<1x32x8xbf16>
      %75 = vector.shape_cast %74 : vector<1x32x8xbf16> to vector<32x8xbf16>
      %cst_55 = arith.constant dense<0.000000e+00> : vector<8x8xf32>
      %76 = tpu.matmul %73, %75, %cst_55 {dimension_numbers = #tpu.dot_dimension_numbers<[1], [0], [0], [1], [0, 0, 1, 1], [], []>} : vector<8x32xbf16>, vector<32x8xbf16>, vector<8x8xf32> -> vector<8x8xf32>
      %c0_56 = arith.constant 0 : index
      %c0_57 = arith.constant 0 : index
      %c0_58 = arith.constant 0 : index
      %77 = vector.load %arg10[%c0_56, %c0_57, %c0_58] : memref<4x1x8xf32, #tpu.memory_space<vmem>>, vector<1x1x8xf32>
      %78 = vector.shape_cast %77 : vector<1x1x8xf32> to vector<1x8xf32>
      %79 = vector.broadcast %78 : vector<1x8xf32> to vector<8x8xf32>
      %80 = arith.addf %76, %79 : vector<8x8xf32>
      %cst_59 = arith.constant 0.353553385 : f32
      %81 = vector.broadcast %cst_59 : f32 to vector<8x8xf32>
      %82 = arith.mulf %80, %81 : vector<8x8xf32>
      %83 = arith.truncf %82 : vector<8x8xf32> to vector<8x8xbf16>
      %c0_60 = arith.constant 0 : index
      %c0_61 = arith.constant 0 : index
      %c0_62 = arith.constant 0 : index
      %84 = vector.load %arg14[%c0_60, %c0_61, %c0_62] : memref<4x8x8xbf16, #tpu.memory_space<vmem>>, vector<1x8x8xbf16>
      %85 = vector.shape_cast %84 : vector<1x8x8xbf16> to vector<8x8xbf16>
      %86 = vector.shape_cast %83 : vector<8x8xbf16> to vector<1x8x8xbf16>
      tpu.vector_store %arg14[%c0_60, %c0_61, %c0_62], %86 {strides = array<i32>} : memref<4x8x8xbf16, #tpu.memory_space<vmem>>, vector<1x8x8xbf16>,
      %c1 = arith.constant 1 : index
      %c0_63 = arith.constant 0 : index
      %c0_64 = arith.constant 0 : index
      %87 = vector.load %arg9[%c1, %c0_63, %c0_64] : memref<4x32x8xbf16, #tpu.memory_space<vmem>>, vector<1x32x8xbf16>
      %88 = vector.shape_cast %87 : vector<1x32x8xbf16> to vector<32x8xbf16>
      %cst_65 = arith.constant dense<0.000000e+00> : vector<8x8xf32>
      %89 = tpu.matmul %73, %88, %cst_65 {dimension_numbers = #tpu.dot_dimension_numbers<[1], [0], [0], [1], [0, 0, 1, 1], [], []>} : vector<8x32xbf16>, vector<32x8xbf16>, vector<8x8xf32> -> vector<8x8xf32>
      %c1_66 = arith.constant 1 : index
      %c0_67 = arith.constant 0 : index
      %c0_68 = arith.constant 0 : index
      %90 = vector.load %arg10[%c1_66, %c0_67, %c0_68] : memref<4x1x8xf32, #tpu.memory_space<vmem>>, vector<1x1x8xf32>
      %91 = vector.shape_cast %90 : vector<1x1x8xf32> to vector<1x8xf32>
      %92 = vector.broadcast %91 : vector<1x8xf32> to vector<8x8xf32>
      %93 = arith.addf %89, %92 : vector<8x8xf32>
      %cst_69 = arith.constant 0.353553385 : f32
      %94 = vector.broadcast %cst_69 : f32 to vector<8x8xf32>
      %95 = arith.mulf %93, %94 : vector<8x8xf32>
      %96 = arith.truncf %95 : vector<8x8xf32> to vector<8x8xbf16>
      %c1_70 = arith.constant 1 : index
      %c0_71 = arith.constant 0 : index
      %c0_72 = arith.constant 0 : index
      %97 = vector.load %arg14[%c1_70, %c0_71, %c0_72] : memref<4x8x8xbf16, #tpu.memory_space<vmem>>, vector<1x8x8xbf16>
      %98 = vector.shape_cast %97 : vector<1x8x8xbf16> to vector<8x8xbf16>
      %99 = vector.shape_cast %96 : vector<8x8xbf16> to vector<1x8x8xbf16>
      tpu.vector_store %arg14[%c1_70, %c0_71, %c0_72], %99 {strides = array<i32>} : memref<4x8x8xbf16, #tpu.memory_space<vmem>>, vector<1x8x8xbf16>,
      %c2 = arith.constant 2 : index
      %c0_73 = arith.constant 0 : index
      %c0_74 = arith.constant 0 : index
      %100 = vector.load %arg9[%c2, %c0_73, %c0_74] : memref<4x32x8xbf16, #tpu.memory_space<vmem>>, vector<1x32x8xbf16>
      %101 = vector.shape_cast %100 : vector<1x32x8xbf16> to vector<32x8xbf16>
      %cst_75 = arith.constant dense<0.000000e+00> : vector<8x8xf32>
      %102 = tpu.matmul %73, %101, %cst_75 {dimension_numbers = #tpu.dot_dimension_numbers<[1], [0], [0], [1], [0, 0, 1, 1], [], []>} : vector<8x32xbf16>, vector<32x8xbf16>, vector<8x8xf32> -> vector<8x8xf32>
      %c2_76 = arith.constant 2 : index
      %c0_77 = arith.constant 0 : index
      %c0_78 = arith.constant 0 : index
      %103 = vector.load %arg10[%c2_76, %c0_77, %c0_78] : memref<4x1x8xf32, #tpu.memory_space<vmem>>, vector<1x1x8xf32>
      %104 = vector.shape_cast %103 : vector<1x1x8xf32> to vector<1x8xf32>
      %105 = vector.broadcast %104 : vector<1x8xf32> to vector<8x8xf32>
      %106 = arith.addf %102, %105 : vector<8x8xf32>
      %cst_79 = arith.constant 0.353553385 : f32
      %107 = vector.broadcast %cst_79 : f32 to vector<8x8xf32>
      %108 = arith.mulf %106, %107 : vector<8x8xf32>
      %109 = arith.truncf %108 : vector<8x8xf32> to vector<8x8xbf16>
      %c2_80 = arith.constant 2 : index
      %c0_81 = arith.constant 0 : index
      %c0_82 = arith.constant 0 : index
      %110 = vector.load %arg14[%c2_80, %c0_81, %c0_82] : memref<4x8x8xbf16, #tpu.memory_space<vmem>>, vector<1x8x8xbf16>
      %111 = vector.shape_cast %110 : vector<1x8x8xbf16> to vector<8x8xbf16>
      %112 = vector.shape_cast %109 : vector<8x8xbf16> to vector<1x8x8xbf16>
      tpu.vector_store %arg14[%c2_80, %c0_81, %c0_82], %112 {strides = array<i32>} : memref<4x8x8xbf16, #tpu.memory_space<vmem>>, vector<1x8x8xbf16>,
      %c3 = arith.constant 3 : index
      %c0_83 = arith.constant 0 : index
      %c0_84 = arith.constant 0 : index
      %113 = vector.load %arg9[%c3, %c0_83, %c0_84] : memref<4x32x8xbf16, #tpu.memory_space<vmem>>, vector<1x32x8xbf16>
      %114 = vector.shape_cast %113 : vector<1x32x8xbf16> to vector<32x8xbf16>
      %cst_85 = arith.constant dense<0.000000e+00> : vector<8x8xf32>
      %115 = tpu.matmul %73, %114, %cst_85 {dimension_numbers = #tpu.dot_dimension_numbers<[1], [0], [0], [1], [0, 0, 1, 1], [], []>} : vector<8x32xbf16>, vector<32x8xbf16>, vector<8x8xf32> -> vector<8x8xf32>
      %c3_86 = arith.constant 3 : index
      %c0_87 = arith.constant 0 : index
      %c0_88 = arith.constant 0 : index
      %116 = vector.load %arg10[%c3_86, %c0_87, %c0_88] : memref<4x1x8xf32, #tpu.memory_space<vmem>>, vector<1x1x8xf32>
      %117 = vector.shape_cast %116 : vector<1x1x8xf32> to vector<1x8xf32>
      %118 = vector.broadcast %117 : vector<1x8xf32> to vector<8x8xf32>
      %119 = arith.addf %115, %118 : vector<8x8xf32>
      %cst_89 = arith.constant 0.353553385 : f32
      %120 = vector.broadcast %cst_89 : f32 to vector<8x8xf32>
      %121 = arith.mulf %119, %120 : vector<8x8xf32>
      %122 = arith.truncf %121 : vector<8x8xf32> to vector<8x8xbf16>
      %c3_90 = arith.constant 3 : index
      %c0_91 = arith.constant 0 : index
      %c0_92 = arith.constant 0 : index
      %123 = vector.load %arg14[%c3_90, %c0_91, %c0_92] : memref<4x8x8xbf16, #tpu.memory_space<vmem>>, vector<1x8x8xbf16>
      %124 = vector.shape_cast %123 : vector<1x8x8xbf16> to vector<8x8xbf16>
      %125 = vector.shape_cast %122 : vector<8x8xbf16> to vector<1x8x8xbf16>
      tpu.vector_store %arg14[%c3_90, %c0_91, %c0_92], %125 {strides = array<i32>} : memref<4x8x8xbf16, #tpu.memory_space<vmem>>, vector<1x8x8xbf16>,
      %cst_93 = arith.constant 0xFF800000 : f32
      %126 = vector.broadcast %cst_93 : f32 to vector<4x8x1xf32>
      %c0_94 = arith.constant 0 : index
      %c0_95 = arith.constant 0 : index
      %c0_96 = arith.constant 0 : index
      %127 = vector.load %arg15[%c0_94, %c0_95, %c0_96] : memref<4x8x1xf32, #tpu.memory_space<vmem>>, vector<4x8x1xf32>
      tpu.vector_store %arg15[%c0_94, %c0_95, %c0_96], %126 {strides = array<i32>} : memref<4x8x1xf32, #tpu.memory_space<vmem>>, vector<4x8x1xf32>,
      %cst_97 = arith.constant 0.000000e+00 : f32
      %128 = vector.broadcast %cst_97 : f32 to vector<4x8x1xf32>
      %c0_98 = arith.constant 0 : index
      %c0_99 = arith.constant 0 : index
      %c0_100 = arith.constant 0 : index
      %129 = vector.load %arg16[%c0_98, %c0_99, %c0_100] : memref<4x8x1xf32, #tpu.memory_space<vmem>>, vector<4x8x1xf32>
      tpu.vector_store %arg16[%c0_98, %c0_99, %c0_100], %128 {strides = array<i32>} : memref<4x8x1xf32, #tpu.memory_space<vmem>>, vector<4x8x1xf32>,
      %cst_101 = arith.constant 0.000000e+00 : f32
      %130 = vector.broadcast %cst_101 : f32 to vector<4x8x8xf32>
      %c0_102 = arith.constant 0 : index
      %c0_103 = arith.constant 0 : index
      %c0_104 = arith.constant 0 : index
      %131 = vector.load %arg17[%c0_102, %c0_103, %c0_104] : memref<4x8x8xf32, #tpu.memory_space<vmem>>, vector<4x8x8xf32>
      tpu.vector_store %arg17[%c0_102, %c0_103, %c0_104], %130 {strides = array<i32>} : memref<4x8x8xf32, #tpu.memory_space<vmem>>, vector<4x8x8xf32>,
    } else {
    }
    %c0_3 = arith.constant 0 : index
    %c0_4 = arith.constant 0 : index
    %c0_5 = arith.constant 0 : index
    %8 = vector.load %arg14[%c0_3, %c0_4, %c0_5] : memref<4x8x8xbf16, #tpu.memory_space<vmem>>, vector<4x8x8xbf16>
    %c0_6 = arith.constant 0 : index
    %c0_7 = arith.constant 0 : index
    %c0_8 = arith.constant 0 : index
    %c0_9 = arith.constant 0 : index
    %9 = vector.load %arg5[%c0_6, %c0_7, %c0_8, %c0_9] : memref<1x4x8x8xbf16, #tpu.memory_space<vmem>>, vector<1x4x8x8xbf16>
    %10 = vector.shape_cast %9 : vector<1x4x8x8xbf16> to vector<4x8x8xbf16>
    "tpu.trace_start"() <{level = 10 : i32, message = "hqe,hke->hqk"}> : () -> ()
    %cst = arith.constant dense<0.000000e+00> : vector<4x8x8xf32>
    %11 = tpu.matmul %8, %10, %cst {dimension_numbers = #tpu.dot_dimension_numbers<[2], [2], [1], [1], [0, 0, 0, 1, 1, 1], [0], [0]>} : vector<4x8x8xbf16>, vector<4x8x8xbf16>, vector<4x8x8xf32> -> vector<4x8x8xf32>
    "tpu.trace_stop"() : () -> ()
    %c0_10 = arith.constant 0 : index
    %c0_11 = arith.constant 0 : index
    %c0_12 = arith.constant 0 : index
    %12 = vector.load %arg15[%c0_10, %c0_11, %c0_12] : memref<4x8x1xf32, #tpu.memory_space<vmem>>, vector<4x8x1xf32>
    %cst_13 = arith.constant dense<0xFF800000> : vector<4x8xf32>
    %13 = vector.multi_reduction <maximumf>, %11, %cst_13 [2] : vector<4x8x8xf32> to vector<4x8xf32>
    %14 = vector.shape_cast %13 : vector<4x8xf32> to vector<4x8x1xf32>
    %15 = arith.maximumf %12, %14 : vector<4x8x1xf32>
    %c0_14 = arith.constant 0 : index
    %c0_15 = arith.constant 0 : index
    %c0_16 = arith.constant 0 : index
    %16 = vector.load %arg15[%c0_14, %c0_15, %c0_16] : memref<4x8x1xf32, #tpu.memory_space<vmem>>, vector<4x8x1xf32>
    %17 = arith.subf %16, %15 : vector<4x8x1xf32>
    %18 = math.exp %17 : vector<4x8x1xf32>
    %19 = vector.broadcast %15 : vector<4x8x1xf32> to vector<4x8x8xf32>
    %20 = arith.subf %11, %19 : vector<4x8x8xf32>
    %21 = math.exp %20 : vector<4x8x8xf32>
    %c0_17 = arith.constant 0 : index
    %c0_18 = arith.constant 0 : index
    %c0_19 = arith.constant 0 : index
    %22 = vector.load %arg16[%c0_17, %c0_18, %c0_19] : memref<4x8x1xf32, #tpu.memory_space<vmem>>, vector<4x8x1xf32>
    %23 = arith.mulf %18, %22 : vector<4x8x1xf32>
    %cst_20 = arith.constant dense<0.000000e+00> : vector<4x8xf32>
    %24 = vector.multi_reduction <add>, %21, %cst_20 [2] : vector<4x8x8xf32> to vector<4x8xf32>
    %25 = vector.shape_cast %24 : vector<4x8xf32> to vector<4x8x1xf32>
    %26 = arith.addf %23, %25 : vector<4x8x1xf32>
    %c0_21 = arith.constant 0 : index
    %c0_22 = arith.constant 0 : index
    %c0_23 = arith.constant 0 : index
    %27 = vector.load %arg16[%c0_21, %c0_22, %c0_23] : memref<4x8x1xf32, #tpu.memory_space<vmem>>, vector<4x8x1xf32>
    tpu.vector_store %arg16[%c0_21, %c0_22, %c0_23], %26 {strides = array<i32>} : memref<4x8x1xf32, #tpu.memory_space<vmem>>, vector<4x8x1xf32>,
    %c0_24 = arith.constant 0 : index
    %c0_25 = arith.constant 0 : index
    %c0_26 = arith.constant 0 : index
    %28 = vector.load %arg17[%c0_24, %c0_25, %c0_26] : memref<4x8x8xf32, #tpu.memory_space<vmem>>, vector<4x8x8xf32>
    %29 = vector.broadcast %18 : vector<4x8x1xf32> to vector<4x8x8xf32>
    %30 = arith.mulf %29, %28 : vector<4x8x8xf32>
    %31 = arith.truncf %21 : vector<4x8x8xf32> to vector<4x8x8xbf16>
    %c0_27 = arith.constant 0 : index
    %c0_28 = arith.constant 0 : index
    %c0_29 = arith.constant 0 : index
    %c0_30 = arith.constant 0 : index
    %32 = vector.load %arg6[%c0_27, %c0_28, %c0_29, %c0_30] : memref<1x4x8x8xbf16, #tpu.memory_space<vmem>>, vector<1x4x8x8xbf16>
    %33 = vector.shape_cast %32 : vector<1x4x8x8xbf16> to vector<4x8x8xbf16>
    "tpu.trace_start"() <{level = 10 : i32, message = "hqk,hke->hqe"}> : () -> ()
    %cst_31 = arith.constant dense<0.000000e+00> : vector<4x8x8xf32>
    %34 = tpu.matmul %31, %33, %cst_31 {dimension_numbers = #tpu.dot_dimension_numbers<[2], [1], [1], [2], [0, 0, 0, 1, 1, 2], [0], [0]>} : vector<4x8x8xbf16>, vector<4x8x8xbf16>, vector<4x8x8xf32> -> vector<4x8x8xf32>
    "tpu.trace_stop"() : () -> ()
    %35 = arith.addf %30, %34 : vector<4x8x8xf32>
    %c0_32 = arith.constant 0 : index
    %c0_33 = arith.constant 0 : index
    %c0_34 = arith.constant 0 : index
    %36 = vector.load %arg17[%c0_32, %c0_33, %c0_34] : memref<4x8x8xf32, #tpu.memory_space<vmem>>, vector<4x8x8xf32>
    tpu.vector_store %arg17[%c0_32, %c0_33, %c0_34], %35 {strides = array<i32>} : memref<4x8x8xf32, #tpu.memory_space<vmem>>, vector<4x8x8xf32>,
    %c0_35 = arith.constant 0 : index
    %c0_36 = arith.constant 0 : index
    %c0_37 = arith.constant 0 : index
    %37 = vector.load %arg15[%c0_35, %c0_36, %c0_37] : memref<4x8x1xf32, #tpu.memory_space<vmem>>, vector<4x8x1xf32>
    tpu.vector_store %arg15[%c0_35, %c0_36, %c0_37], %15 {strides = array<i32>} : memref<4x8x1xf32, #tpu.memory_space<vmem>>, vector<4x8x1xf32>,
    %c1_i32 = arith.constant 1 : i32
    %38 = arith.cmpi eq, %arg2, %c1_i32 : i32
    %39 = arith.extui %38 : i1 to i32
    %c0_i32_38 = arith.constant 0 : i32
    %40 = arith.cmpi ne, %39, %c0_i32_38 : i32
    scf.if %40 {
      %c0_39 = arith.constant 0 : index
      %c0_40 = arith.constant 0 : index
      %c0_41 = arith.constant 0 : index
      %41 = vector.load %arg17[%c0_39, %c0_40, %c0_41] : memref<4x8x8xf32, #tpu.memory_space<vmem>>, vector<4x8x8xf32>
      %c0_42 = arith.constant 0 : index
      %c0_43 = arith.constant 0 : index
      %c0_44 = arith.constant 0 : index
      %42 = vector.load %arg16[%c0_42, %c0_43, %c0_44] : memref<4x8x1xf32, #tpu.memory_space<vmem>>, vector<4x8x1xf32>
      %43 = tpu.reciprocal %42 {approx = true} : vector<4x8x1xf32> -> vector<4x8x1xf32>
      %44 = vector.broadcast %43 : vector<4x8x1xf32> to vector<4x8x8xf32>
      %45 = arith.mulf %41, %44 : vector<4x8x8xf32>
      %cst_45 = arith.constant 0.000000e+00 : f32
      %46 = vector.broadcast %cst_45 : f32 to vector<8x32xf32>
      %47 = vector.extract_strided_slice %45 {offsets = [0, 0, 0], sizes = [1, 8, 8], strides = [1, 1, 1]} : vector<4x8x8xf32> to vector<1x8x8xf32>
      %48 = vector.shape_cast %47 : vector<1x8x8xf32> to vector<8x8xf32>
      %49 = arith.truncf %48 : vector<8x8xf32> to vector<8x8xbf16>
      %c0_46 = arith.constant 0 : index
      %c0_47 = arith.constant 0 : index
      %c0_48 = arith.constant 0 : index
      %50 = vector.load %arg11[%c0_46, %c0_47, %c0_48] : memref<4x8x32xbf16, #tpu.memory_space<vmem>>, vector<1x8x32xbf16>
      %51 = vector.shape_cast %50 : vector<1x8x32xbf16> to vector<8x32xbf16>
      %cst_49 = arith.constant dense<0.000000e+00> : vector<8x32xf32>
      %52 = tpu.matmul %49, %51, %cst_49 {dimension_numbers = #tpu.dot_dimension_numbers<[1], [0], [0], [1], [0, 0, 1, 1], [], []>} : vector<8x8xbf16>, vector<8x32xbf16>, vector<8x32xf32> -> vector<8x32xf32>
      %53 = arith.addf %46, %52 : vector<8x32xf32>
      %54 = vector.extract_strided_slice %45 {offsets = [1, 0, 0], sizes = [1, 8, 8], strides = [1, 1, 1]} : vector<4x8x8xf32> to vector<1x8x8xf32>
      %55 = vector.shape_cast %54 : vector<1x8x8xf32> to vector<8x8xf32>
      %56 = arith.truncf %55 : vector<8x8xf32> to vector<8x8xbf16>
      %c1 = arith.constant 1 : index
      %c0_50 = arith.constant 0 : index
      %c0_51 = arith.constant 0 : index
      %57 = vector.load %arg11[%c1, %c0_50, %c0_51] : memref<4x8x32xbf16, #tpu.memory_space<vmem>>, vector<1x8x32xbf16>
      %58 = vector.shape_cast %57 : vector<1x8x32xbf16> to vector<8x32xbf16>
      %cst_52 = arith.constant dense<0.000000e+00> : vector<8x32xf32>
      %59 = tpu.matmul %56, %58, %cst_52 {dimension_numbers = #tpu.dot_dimension_numbers<[1], [0], [0], [1], [0, 0, 1, 1], [], []>} : vector<8x8xbf16>, vector<8x32xbf16>, vector<8x32xf32> -> vector<8x32xf32>
      %60 = arith.addf %53, %59 : vector<8x32xf32>
      %61 = vector.extract_strided_slice %45 {offsets = [2, 0, 0], sizes = [1, 8, 8], strides = [1, 1, 1]} : vector<4x8x8xf32> to vector<1x8x8xf32>
      %62 = vector.shape_cast %61 : vector<1x8x8xf32> to vector<8x8xf32>
      %63 = arith.truncf %62 : vector<8x8xf32> to vector<8x8xbf16>
      %c2 = arith.constant 2 : index
      %c0_53 = arith.constant 0 : index
      %c0_54 = arith.constant 0 : index
      %64 = vector.load %arg11[%c2, %c0_53, %c0_54] : memref<4x8x32xbf16, #tpu.memory_space<vmem>>, vector<1x8x32xbf16>
      %65 = vector.shape_cast %64 : vector<1x8x32xbf16> to vector<8x32xbf16>
      %cst_55 = arith.constant dense<0.000000e+00> : vector<8x32xf32>
      %66 = tpu.matmul %63, %65, %cst_55 {dimension_numbers = #tpu.dot_dimension_numbers<[1], [0], [0], [1], [0, 0, 1, 1], [], []>} : vector<8x8xbf16>, vector<8x32xbf16>, vector<8x32xf32> -> vector<8x32xf32>
      %67 = arith.addf %60, %66 : vector<8x32xf32>
      %68 = vector.extract_strided_slice %45 {offsets = [3, 0, 0], sizes = [1, 8, 8], strides = [1, 1, 1]} : vector<4x8x8xf32> to vector<1x8x8xf32>
      %69 = vector.shape_cast %68 : vector<1x8x8xf32> to vector<8x8xf32>
      %70 = arith.truncf %69 : vector<8x8xf32> to vector<8x8xbf16>
      %c3 = arith.constant 3 : index
      %c0_56 = arith.constant 0 : index
      %c0_57 = arith.constant 0 : index
      %71 = vector.load %arg11[%c3, %c0_56, %c0_57] : memref<4x8x32xbf16, #tpu.memory_space<vmem>>, vector<1x8x32xbf16>
      %72 = vector.shape_cast %71 : vector<1x8x32xbf16> to vector<8x32xbf16>
      %cst_58 = arith.constant dense<0.000000e+00> : vector<8x32xf32>
      %73 = tpu.matmul %70, %72, %cst_58 {dimension_numbers = #tpu.dot_dimension_numbers<[1], [0], [0], [1], [0, 0, 1, 1], [], []>} : vector<8x8xbf16>, vector<8x32xbf16>, vector<8x32xf32> -> vector<8x32xf32>
      %74 = arith.addf %67, %73 : vector<8x32xf32>
      %c0_59 = arith.constant 0 : index
      %c0_60 = arith.constant 0 : index
      %75 = vector.load %arg12[%c0_59, %c0_60] : memref<1x32xf32, #tpu.memory_space<vmem>>, vector<1x32xf32>
      %76 = vector.broadcast %75 : vector<1x32xf32> to vector<8x32xf32>
      %77 = arith.addf %74, %76 : vector<8x32xf32>
      %c0_61 = arith.constant 0 : index
      %c0_62 = arith.constant 0 : index
      %c0_63 = arith.constant 0 : index
      %78 = vector.load %arg3[%c0_61, %c0_62, %c0_63] : memref<1x8x32xf32, #tpu.memory_space<vmem>>, vector<1x8x32xf32>
      %79 = vector.shape_cast %78 : vector<1x8x32xf32> to vector<8x32xf32>
      %80 = vector.broadcast %4 : vector<1x32xf32> to vector<8x32xf32>
      %81 = arith.mulf %80, %77 : vector<8x32xf32>
      %82 = arith.addf %79, %81 : vector<8x32xf32>
      %c0_64 = arith.constant 0 : index
      %c0_65 = arith.constant 0 : index
      %c0_66 = arith.constant 0 : index
      %83 = vector.load %arg13[%c0_64, %c0_65, %c0_66] : memref<1x8x32xf32, #tpu.memory_space<vmem>>, vector<1x8x32xf32>
      %84 = vector.shape_cast %83 : vector<1x8x32xf32> to vector<8x32xf32>
      %85 = vector.shape_cast %82 : vector<8x32xf32> to vector<1x8x32xf32>
      tpu.vector_store %arg13[%c0_64, %c0_65, %c0_66], %85 {strides = array<i32>} : memref<1x8x32xf32, #tpu.memory_space<vmem>>, vector<1x8x32xf32>,
    } else {
    }
    return
  }
  func.func @transform_0(%arg0: i32, %arg1: i32, %arg2: i32) -> (i32, i32, i32) {
    %c0_i32 = arith.constant 0 : i32
    %c0_i32_0 = arith.constant 0 : i32
    return %arg0, %arg1, %c0_i32 : i32, i32, i32
  }
  func.func @transform_1(%arg0: i32, %arg1: i32, %arg2: i32) -> (i32, i32, i32) {
    %c0_i32 = arith.constant 0 : i32
    %c0_i32_0 = arith.constant 0 : i32
    %c0_i32_1 = arith.constant 0 : i32
    return %arg0, %c0_i32, %c0_i32_0 : i32, i32, i32
  }
  func.func @transform_2(%arg0: i32, %arg1: i32, %arg2: i32) -> (i32, i32, i32, i32) {
    %c0_i32 = arith.constant 0 : i32
    %c0_i32_0 = arith.constant 0 : i32
    %c0_i32_1 = arith.constant 0 : i32
    return %arg0, %c0_i32, %arg2, %c0_i32_0 : i32, i32, i32, i32
  }
  func.func @transform_3(%arg0: i32, %arg1: i32, %arg2: i32) -> (i32, i32, i32, i32) {
    %c0_i32 = arith.constant 0 : i32
    %c0_i32_0 = arith.constant 0 : i32
    %c0_i32_1 = arith.constant 0 : i32
    return %arg0, %c0_i32, %arg2, %c0_i32_0 : i32, i32, i32, i32
  }
  func.func @transform_4(%arg0: i32, %arg1: i32, %arg2: i32) -> (i32, i32) {
    %c0_i32 = arith.constant 0 : i32
    %c0_i32_0 = arith.constant 0 : i32
    %c0_i32_1 = arith.constant 0 : i32
    return %c0_i32, %c0_i32_0 : i32, i32
  }
  func.func @transform_5(%arg0: i32, %arg1: i32, %arg2: i32) -> (i32, i32) {
    %c0_i32 = arith.constant 0 : i32
    %c0_i32_0 = arith.constant 0 : i32
    %c0_i32_1 = arith.constant 0 : i32
    return %c0_i32, %c0_i32_0 : i32, i32
  }
  func.func @transform_6(%arg0: i32, %arg1: i32, %arg2: i32) -> (i32, i32, i32) {
    %c0_i32 = arith.constant 0 : i32
    %c0_i32_0 = arith.constant 0 : i32
    %c0_i32_1 = arith.constant 0 : i32
    %c0_i32_2 = arith.constant 0 : i32
    return %c0_i32, %c0_i32_0, %c0_i32_1 : i32, i32, i32
  }
  func.func @transform_7(%arg0: i32, %arg1: i32, %arg2: i32) -> (i32, i32, i32) {
    %c0_i32 = arith.constant 0 : i32
    %c0_i32_0 = arith.constant 0 : i32
    %c0_i32_1 = arith.constant 0 : i32
    %c0_i32_2 = arith.constant 0 : i32
    return %c0_i32, %c0_i32_0, %c0_i32_1 : i32, i32, i32
  }
  func.func @transform_8(%arg0: i32, %arg1: i32, %arg2: i32) -> (i32, i32, i32) {
    %c0_i32 = arith.constant 0 : i32
    %c0_i32_0 = arith.constant 0 : i32
    %c0_i32_1 = arith.constant 0 : i32
    %c0_i32_2 = arith.constant 0 : i32
    return %c0_i32, %c0_i32_0, %c0_i32_1 : i32, i32, i32
  }
  func.func @transform_9(%arg0: i32, %arg1: i32, %arg2: i32) -> (i32, i32) {
    %c0_i32 = arith.constant 0 : i32
    %c0_i32_0 = arith.constant 0 : i32
    %c0_i32_1 = arith.constant 0 : i32
    return %c0_i32, %c0_i32_0 : i32, i32
  }
  func.func @transform_10(%arg0: i32, %arg1: i32, %arg2: i32) -> (i32, i32, i32) {
    %c0_i32 = arith.constant 0 : i32
    %c0_i32_0 = arith.constant 0 : i32
    return %arg0, %arg1, %c0_i32 : i32, i32, i32
  }
}

</mosaic_0001>

<llo_original>
// kernel: tpu_custom_call.1
$region0: #{tpu_custom_call.1}
  #allocation0 [shape = 'u32[]', space=smem, size = 0x4, offset = 0x4, fixed_abs, tag = 'smem constant byte address 0x4 - core index']
  #allocation1 [shape = 'u32[144,128]{1,0:T(1,128)}', space=vmem, size = 0x12000, scoped, tag = 'internal scratch']
  #allocation2 [shape = 'bf16[4,8,8]{2,1,0:T(8,128)(2,1)}', space=vmem, size = 0x2000, scoped, tag = 'scratch operand']
  #allocation3 [shape = 'f32[4,8,1]{2,1,0:T(8,128)}', space=vmem, size = 0x4000, scoped, tag = 'scratch operand']
  #allocation4 [shape = 'f32[4,8,1]{2,1,0:T(8,128)}', space=vmem, size = 0x4000, scoped, tag = 'scratch operand']
  #allocation5 [shape = 'f32[4,8,8]{2,1,0:T(8,128)}', space=vmem, size = 0x4000, scoped, tag = 'scratch operand']
  %s0 = inlined_call_operand.vmem [shape: f32[2,16,32], index: 0, kind: input, shape index: {}]
  %s1 = inlined_call_operand.vmem [shape: f32[2,6,32], index: 1, kind: input, shape index: {}]
  %s2 = inlined_call_operand.vmem [shape: bf16[2,4,16,8], index: 2, kind: input, shape index: {}]
  %s3 = inlined_call_operand.vmem [shape: bf16[2,4,16,8], index: 3, kind: input, shape index: {}]
  %s4 = inlined_call_operand.vmem [shape: f32[1,32], index: 4, kind: input, shape index: {}]
  %s5 = inlined_call_operand.vmem [shape: f32[1,32], index: 5, kind: input, shape index: {}]
  %s6 = inlined_call_operand.vmem [shape: bf16[4,32,8], index: 6, kind: input, shape index: {}]
  %s7 = inlined_call_operand.vmem [shape: f32[4,1,8], index: 7, kind: input, shape index: {}]
  %s8 = inlined_call_operand.vmem [shape: bf16[4,8,32], index: 8, kind: input, shape index: {}]
  %s9 = inlined_call_operand.vmem [shape: f32[1,32], index: 9, kind: input, shape index: {}]
  %s10 = inlined_call_operand.hbm [shape: f32[2,16,32], index: 10, kind: output, shape index: {}]
  %s11 = sld [smem:[#allocation0]]
  $region163: #{tpu_custom_call.1} parent=0
    _
  %s13 = ssub.s32 1, %s11
  %s14 = scalar_select 0, %s13, %s11
  $region1: #{tpu_custom_call.1} parent=0
    #allocation6 [shape = 'u8[16384]{0}', space=vmem, size = 0x4000, scoped, tag = 'input window, operand 2']
    #allocation7 [shape = 'u8[16384]{0}', space=vmem, size = 0x4000, scoped, tag = 'input window, operand 3']
    #allocation8 [shape = 'u8[8192]{0}', space=vmem, size = 0x2000, scoped, tag = 'output window, operand 0']
    #allocation9 [shape = 's32[2]{0}', space=sflag, size = 0x8, scoped, tag = 'scoped memory for tpu_custom_call.1']
    %15 = vsyncpa [#allocation9], 0
    %s16 = scalar_lea.sflag [#allocation9], 1
    %17 = vsyncpa %s16, 0
    loop: start=0, step=1, limit=10
    $region2: #{tpu_custom_call.1} parent=1 // loop_pre_header
      _
    $region3: #{tpu_custom_call.1} parent=1 // loop_header
      %s19 = sphi 0, %s23
      %p20 = scmp.ge.s32.totalorder %s19, 10
      %s26 = sphi 0, %s45
      %s27 = sphi 0, %s41
      %s28 = sphi 0, %s37
      %s29 = sphi 0, %s26
      %s30 = sphi 0, %s27
      %s31 = sphi 0, %s28
      %s32 = sphi 0, %s29
      %s33 = sphi 0, %s30
      %s34 = sphi 0, %s31
      %s50 = sphi 0, %s52
      %s53 = sphi 0, %s50
      %s54 = sphi 0, %s53
      %s70 = sphi 0, %s54
      %s76 = sphi 0, %s78
      %s79 = sphi 0, %s76
      %s80 = sphi 0, %s79
      %s96 = sphi 0, %s80
      %s104 = sphi 0, %s106
      %s107 = sphi 0, %s104
      %s108 = sphi 0, %s107
      %s124 = sphi 0, %s108
      %s132 = sphi 0, %s134
      %s135 = sphi 0, %s132
      %s136 = sphi 0, %s135
      %s152 = sphi 0, %s136
      %s156 = sphi 0, %s156
      %s158 = sphi 0, %s156
      %s159 = sphi 0, %s158
      %s173 = sphi 0, %s159
      %s177 = sphi 0, %s177
      %s179 = sphi 0, %s177
      %s180 = sphi 0, %s179
      %s194 = sphi 0, %s180
      %s198 = sphi 0, %s198
      %s200 = sphi 0, %s198
      %s201 = sphi 0, %s200
      %s215 = sphi 0, %s201
      %s219 = sphi 0, %s219
      %s221 = sphi 0, %s219
      %s222 = sphi 0, %s221
      %s236 = sphi 0, %s222
      %s240 = sphi 0, %s240
      %s242 = sphi 0, %s240
      %s243 = sphi 0, %s242
      %s257 = sphi 0, %s243
      %s261 = sphi 0, %s261
      %s263 = sphi 0, %s261
      %s264 = sphi 0, %s263
      %s278 = sphi 0, %s264
      %s286 = sphi 0, %s288
      %s289 = sphi 0, %s286
      %s290 = sphi 0, %s289
      %s306 = sphi 0, %s290
    $region4: #{tpu_custom_call.1} parent=1 // loop_header_branch
      %22 = sbr.rel (%p20) target = $region8
    $region5: #{tpu_custom_call.1} parent=1 // loop_body
      %s24 = ssub.s32 %s19, 1
      %s25 = ssub.s32 %s19, 2
      %s35 = sadd.s32 1, %s28
      %p36 = scmp.ge.s32.totalorder %s35, 2
      %s37 = scalar_select %p36, 0, %s35
      %s38 = sadd.s32 1, %s27
      %s39 = scalar_select %p36, %s38, %s27
      %p40 = scmp.ge.s32.totalorder %s39, 2
      %s41 = scalar_select %p40, 0, %s39
      %s42 = sadd.s32 1, %s26
      %s43 = scalar_select %p40, %s42, %s26
      %p44 = scmp.ge.s32.totalorder %s43, 2
      %s45 = scalar_select %p44, 0, %s43
      %s46 = ssub.s32 %s26, %s45
      %s47 = ssub.s32 %s27, %s41
      %s48 = sor.u32 %s46, %s47
      %p49 = scmp.eq.s32.totalorder %s48, 0
      %s51 = sadd.s32 %s50, 1
      %s52 = scalar_select %p49, %s50, %s51
      %p55 = pneg %p49
      %p56 = scmp.eq.s32.totalorder %s19, 7
      %p57 = por %p55, %p56
      %p58 = scmp.ne.s32.totalorder %s50, %s53
      %p59 = scmp.eq.s32.totalorder %s19, 0
      %p60 = por %p58, %p59
      %p61 = scmp.ne.s32.totalorder %s50, %s53
      %p62 = scmp.eq.s32.totalorder %s24, 7
      %p63 = por %p61, %p62
      %p64 = scmp.ne.s32.totalorder %s53, %s54
      %p65 = scmp.eq.s32.totalorder %s24, 0
      %p66 = por %p64, %p65
      %p67 = scmp.ne.s32.totalorder %s53, %s54
      %p68 = scmp.eq.s32.totalorder %s25, 7
      %p69 = por %p67, %p68
      %p71 = scmp.ne.s32.totalorder %s54, %s70
      %p72 = scmp.eq.s32.totalorder %s25, 0
      %p73 = por %p71, %p72
      %s74 = ssub.s32 %s26, %s45
      %p75 = scmp.eq.s32.totalorder %s74, 0
      %s77 = sadd.s32 %s76, 1
      %s78 = scalar_select %p75, %s76, %s77
      %p81 = pneg %p75
      %p82 = scmp.eq.s32.totalorder %s19, 7
      %p83 = por %p81, %p82
      %p84 = scmp.ne.s32.totalorder %s76, %s79
      %p85 = scmp.eq.s32.totalorder %s19, 0
      %p86 = por %p84, %p85
      %p87 = scmp.ne.s32.totalorder %s76, %s79
      %p88 = scmp.eq.s32.totalorder %s24, 7
      %p89 = por %p87, %p88
      %p90 = scmp.ne.s32.totalorder %s79, %s80
      %p91 = scmp.eq.s32.totalorder %s24, 0
      %p92 = por %p90, %p91
      %p93 = scmp.ne.s32.totalorder %s79, %s80
      %p94 = scmp.eq.s32.totalorder %s25, 7
      %p95 = por %p93, %p94
      %p97 = scmp.ne.s32.totalorder %s80, %s96
      %p98 = scmp.eq.s32.totalorder %s25, 0
      %p99 = por %p97, %p98
      %s100 = ssub.s32 %s26, %s45
      %s101 = ssub.s32 %s28, %s37
      %s102 = sor.u32 %s100, %s101
      %p103 = scmp.eq.s32.totalorder %s102, 0
      %s105 = sadd.s32 %s104, 1
      %s106 = scalar_select %p103, %s104, %s105
      %p109 = pneg %p103
      %p110 = scmp.eq.s32.totalorder %s19, 7
      %p111 = por %p109, %p110
      %p112 = scmp.ne.s32.totalorder %s104, %s107
      %p113 = scmp.eq.s32.totalorder %s19, 0
      %p114 = por %p112, %p113
      %p115 = scmp.ne.s32.totalorder %s104, %s107
      %p116 = scmp.eq.s32.totalorder %s24, 7
      %p117 = por %p115, %p116
      %p118 = scmp.ne.s32.totalorder %s107, %s108
      %p119 = scmp.eq.s32.totalorder %s24, 0
      %p120 = por %p118, %p119
      %p121 = scmp.ne.s32.totalorder %s107, %s108
      %p122 = scmp.eq.s32.totalorder %s25, 7
      %p123 = por %p121, %p122
      %p125 = scmp.ne.s32.totalorder %s108, %s124
      %p126 = scmp.eq.s32.totalorder %s25, 0
      %p127 = por %p125, %p126
      %s128 = ssub.s32 %s26, %s45
      %s129 = ssub.s32 %s28, %s37
      %s130 = sor.u32 %s128, %s129
      %p131 = scmp.eq.s32.totalorder %s130, 0
      %s133 = sadd.s32 %s132, 1
      %s134 = scalar_select %p131, %s132, %s133
      %p137 = pneg %p131
      %p138 = scmp.eq.s32.totalorder %s19, 7
      %p139 = por %p137, %p138
      %p140 = scmp.ne.s32.totalorder %s132, %s135
      %p141 = scmp.eq.s32.totalorder %s19, 0
      %p142 = por %p140, %p141
      %p143 = scmp.ne.s32.totalorder %s132, %s135
      %p144 = scmp.eq.s32.totalorder %s24, 7
      %p145 = por %p143, %p144
      %p146 = scmp.ne.s32.totalorder %s135, %s136
      %p147 = scmp.eq.s32.totalorder %s24, 0
      %p148 = por %p146, %p147
      %p149 = scmp.ne.s32.totalorder %s135, %s136
      %p150 = scmp.eq.s32.totalorder %s25, 7
      %p151 = por %p149, %p150
      %p153 = scmp.ne.s32.totalorder %s136, %s152
      %p154 = scmp.eq.s32.totalorder %s25, 0
      %p155 = por %p153, %p154
      %s157 = sadd.s32 %s156, 1
      %p160 = scmp.eq.s32.totalorder %s19, 7
      %p161 = scmp.ne.s32.totalorder %s156, %s158
      %p162 = scmp.eq.s32.totalorder %s19, 0
      %p163 = por %p161, %p162
      %p164 = scmp.ne.s32.totalorder %s156, %s158
      %p165 = scmp.eq.s32.totalorder %s24, 7
      %p166 = por %p164, %p165
      %p167 = scmp.ne.s32.totalorder %s158, %s159
      %p168 = scmp.eq.s32.totalorder %s24, 0
      %p169 = por %p167, %p168
      %p170 = scmp.ne.s32.totalorder %s158, %s159
      %p171 = scmp.eq.s32.totalorder %s25, 7
      %p172 = por %p170, %p171
      %p174 = scmp.ne.s32.totalorder %s159, %s173
      %p175 = scmp.eq.s32.totalorder %s25, 0
      %p176 = por %p174, %p175
      %s178 = sadd.s32 %s177, 1
      %p181 = scmp.eq.s32.totalorder %s19, 7
      %p182 = scmp.ne.s32.totalorder %s177, %s179
      %p183 = scmp.eq.s32.totalorder %s19, 0
      %p184 = por %p182, %p183
      %p185 = scmp.ne.s32.totalorder %s177, %s179
      %p186 = scmp.eq.s32.totalorder %s24, 7
      %p187 = por %p185, %p186
      %p188 = scmp.ne.s32.totalorder %s179, %s180
      %p189 = scmp.eq.s32.totalorder %s24, 0
      %p190 = por %p188, %p189
      %p191 = scmp.ne.s32.totalorder %s179, %s180
      %p192 = scmp.eq.s32.totalorder %s25, 7
      %p193 = por %p191, %p192
      %p195 = scmp.ne.s32.totalorder %s180, %s194
      %p196 = scmp.eq.s32.totalorder %s25, 0
      %p197 = por %p195, %p196
      %s199 = sadd.s32 %s198, 1
      %p202 = scmp.eq.s32.totalorder %s19, 7
      %p203 = scmp.ne.s32.totalorder %s198, %s200
      %p204 = scmp.eq.s32.totalorder %s19, 0
      %p205 = por %p203, %p204
      %p206 = scmp.ne.s32.totalorder %s198, %s200
      %p207 = scmp.eq.s32.totalorder %s24, 7
      %p208 = por %p206, %p207
      %p209 = scmp.ne.s32.totalorder %s200, %s201
      %p210 = scmp.eq.s32.totalorder %s24, 0
      %p211 = por %p209, %p210
      %p212 = scmp.ne.s32.totalorder %s200, %s201
      %p213 = scmp.eq.s32.totalorder %s25, 7
      %p214 = por %p212, %p213
      %p216 = scmp.ne.s32.totalorder %s201, %s215
      %p217 = scmp.eq.s32.totalorder %s25, 0
      %p218 = por %p216, %p217
      %s220 = sadd.s32 %s219, 1
      %p223 = scmp.eq.s32.totalorder %s19, 7
      %p224 = scmp.ne.s32.totalorder %s219, %s221
      %p225 = scmp.eq.s32.totalorder %s19, 0
      %p226 = por %p224, %p225
      %p227 = scmp.ne.s32.totalorder %s219, %s221
      %p228 = scmp.eq.s32.totalorder %s24, 7
      %p229 = por %p227, %p228
      %p230 = scmp.ne.s32.totalorder %s221, %s222
      %p231 = scmp.eq.s32.totalorder %s24, 0
      %p232 = por %p230, %p231
      %p233 = scmp.ne.s32.totalorder %s221, %s222
      %p234 = scmp.eq.s32.totalorder %s25, 7
      %p235 = por %p233, %p234
      %p237 = scmp.ne.s32.totalorder %s222, %s236
      %p238 = scmp.eq.s32.totalorder %s25, 0
      %p239 = por %p237, %p238
      %s241 = sadd.s32 %s240, 1
      %p244 = scmp.eq.s32.totalorder %s19, 7
      %p245 = scmp.ne.s32.totalorder %s240, %s242
      %p246 = scmp.eq.s32.totalorder %s19, 0
      %p247 = por %p245, %p246
      %p248 = scmp.ne.s32.totalorder %s240, %s242
      %p249 = scmp.eq.s32.totalorder %s24, 7
      %p250 = por %p248, %p249
      %p251 = scmp.ne.s32.totalorder %s242, %s243
      %p252 = scmp.eq.s32.totalorder %s24, 0
      %p253 = por %p251, %p252
      %p254 = scmp.ne.s32.totalorder %s242, %s243
      %p255 = scmp.eq.s32.totalorder %s25, 7
      %p256 = por %p254, %p255
      %p258 = scmp.ne.s32.totalorder %s243, %s257
      %p259 = scmp.eq.s32.totalorder %s25, 0
      %p260 = por %p258, %p259
      %s262 = sadd.s32 %s261, 1
      %p265 = scmp.eq.s32.totalorder %s19, 7
      %p266 = scmp.ne.s32.totalorder %s261, %s263
      %p267 = scmp.eq.s32.totalorder %s19, 0
      %p268 = por %p266, %p267
      %p269 = scmp.ne.s32.totalorder %s261, %s263
      %p270 = scmp.eq.s32.totalorder %s24, 7
      %p271 = por %p269, %p270
      %p272 = scmp.ne.s32.totalorder %s263, %s264
      %p273 = scmp.eq.s32.totalorder %s24, 0
      %p274 = por %p272, %p273
      %p275 = scmp.ne.s32.totalorder %s263, %s264
      %p276 = scmp.eq.s32.totalorder %s25, 7
      %p277 = por %p275, %p276
      %p279 = scmp.ne.s32.totalorder %s264, %s278
      %p280 = scmp.eq.s32.totalorder %s25, 0
      %p281 = por %p279, %p280
      %s282 = ssub.s32 %s26, %s45
      %s283 = ssub.s32 %s27, %s41
      %s284 = sor.u32 %s282, %s283
      %p285 = scmp.eq.s32.totalorder %s284, 0
      %s287 = sadd.s32 %s286, 1
      %s288 = scalar_select %p285, %s286, %s287
      %p291 = pneg %p285
      %p292 = scmp.eq.s32.totalorder %s19, 7
      %p293 = por %p291, %p292
      %p294 = scmp.ne.s32.totalorder %s286, %s289
      %p295 = scmp.eq.s32.totalorder %s19, 0
      %p296 = por %p294, %p295
      %p297 = scmp.ne.s32.totalorder %s286, %s289
      %p298 = scmp.eq.s32.totalorder %s24, 7
      %p299 = por %p297, %p298
      %p300 = scmp.ne.s32.totalorder %s289, %s290
      %p301 = scmp.eq.s32.totalorder %s24, 0
      %p302 = por %p300, %p301
      %p303 = scmp.ne.s32.totalorder %s289, %s290
      %p304 = scmp.eq.s32.totalorder %s25, 7
      %p305 = por %p303, %p304
      %p307 = scmp.ne.s32.totalorder %s290, %s306
      %p308 = scmp.eq.s32.totalorder %s25, 0
      %p309 = por %p307, %p308
      %p310 = scmp.le.s32.totalorder 1, %s19
      %p311 = scmp.lt.s32.totalorder %s19, 9
      %p312 = pnand %p310, %p311
      %p313 = pneg %p312
      // Predicated region
      $region9: #{tpu_custom_call.1} parent=5 // pred_check
        _
      $region10: #{tpu_custom_call.1} parent=5 // pred_check_branch
        %315 = sbr.rel (%p312) target = $region12
      $region11: #{tpu_custom_call.1} parent=5 // pred_region
        %s316 = ssub.s32 %s19, 1
        // Predicated region
        $region13: #{tpu_custom_call.1} parent=11 // pred_check
          %p317 = pneg %p169
        $region14: #{tpu_custom_call.1} parent=11 // pred_check_branch
          %319 = sbr.rel (%p317) target = $region16
        $region15: #{tpu_custom_call.1} parent=11 // pred_region
          _
        $region16: #{tpu_custom_call.1} parent=11 // pred_fallthru
          _
        // Predicated region
        $region17: #{tpu_custom_call.1} parent=11 // pred_check
          %p320 = pneg %p190
        $region18: #{tpu_custom_call.1} parent=11 // pred_check_branch
          %322 = sbr.rel (%p320) target = $region20
        $region19: #{tpu_custom_call.1} parent=11 // pred_region
          _
        $region20: #{tpu_custom_call.1} parent=11 // pred_fallthru
          _
        // Predicated region
        $region21: #{tpu_custom_call.1} parent=11 // pred_check
          %p323 = pneg %p211
        $region22: #{tpu_custom_call.1} parent=11 // pred_check_branch
          %325 = sbr.rel (%p323) target = $region24
        $region23: #{tpu_custom_call.1} parent=11 // pred_region
          _
        $region24: #{tpu_custom_call.1} parent=11 // pred_fallthru
          _
        // Predicated region
        $region25: #{tpu_custom_call.1} parent=11 // pred_check
          %p326 = pneg %p232
        $region26: #{tpu_custom_call.1} parent=11 // pred_check_branch
          %328 = sbr.rel (%p326) target = $region28
        $region27: #{tpu_custom_call.1} parent=11 // pred_region
          _
        $region28: #{tpu_custom_call.1} parent=11 // pred_fallthru
          _
        // Predicated region
        $region29: #{tpu_custom_call.1} parent=11 // pred_check
          %p329 = pneg %p253
        $region30: #{tpu_custom_call.1} parent=11 // pred_check_branch
          %331 = sbr.rel (%p329) target = $region32
        $region31: #{tpu_custom_call.1} parent=11 // pred_region
          _
        $region32: #{tpu_custom_call.1} parent=11 // pred_fallthru
          _
        // Predicated region
        $region33: #{tpu_custom_call.1} parent=11 // pred_check
          %p332 = pneg %p274
        $region34: #{tpu_custom_call.1} parent=11 // pred_check_branch
          %334 = sbr.rel (%p332) target = $region36
        $region35: #{tpu_custom_call.1} parent=11 // pred_region
          _
        $region36: #{tpu_custom_call.1} parent=11 // pred_fallthru
          _
      $region12: #{tpu_custom_call.1} parent=5 // pred_fallthru
        _
      %p335 = scmp.lt.s32.totalorder %s19, 8
      // Predicated region
      $region37: #{tpu_custom_call.1} parent=5 // pred_check
        %p336 = pneg %p335
      $region38: #{tpu_custom_call.1} parent=5 // pred_check_branch
        %338 = sbr.rel (%p336) target = $region40
      $region39: #{tpu_custom_call.1} parent=5 // pred_region
        // Predicated region
        $region41: #{tpu_custom_call.1} parent=39 // pred_check
          %p339 = pneg %p60
        $region42: #{tpu_custom_call.1} parent=39 // pred_check_branch
          %341 = sbr.rel (%p339) target = $region44
        $region43: #{tpu_custom_call.1} parent=39 // pred_region
          %p342 = scmp.lt.s32.totalorder %s26, 1
          %s343 = scalar_select %p342, %s26, 1
          %p344 = scmp.lt.s32.totalorder %s27, 1
          %s345 = scalar_select %p344, %s27, 1
          %s346 = smul.addr %s343, 2
          %s347 = sadd.s32 %s345, %s346
          %s348 = smul.addr %s347, 8
          %s349 = scalar_lea.vmem %s0, %s348
        $region44: #{tpu_custom_call.1} parent=39 // pred_fallthru
          _
        // Predicated region
        $region45: #{tpu_custom_call.1} parent=39 // pred_check
          %p350 = pneg %p86
        $region46: #{tpu_custom_call.1} parent=39 // pred_check_branch
          %352 = sbr.rel (%p350) target = $region48
        $region47: #{tpu_custom_call.1} parent=39 // pred_region
          %p353 = scmp.lt.s32.totalorder %s26, 1
          %s354 = scalar_select %p353, %s26, 1
          %s355 = smul.addr %s354, 8
          %s356 = scalar_lea.vmem %s1, %s355
        $region48: #{tpu_custom_call.1} parent=39 // pred_fallthru
          _
        // Predicated region
        $region49: #{tpu_custom_call.1} parent=39 // pred_check
          %p357 = pneg %p114
        $region50: #{tpu_custom_call.1} parent=39 // pred_check_branch
          %359 = sbr.rel (%p357) target = $region52
        $region51: #{tpu_custom_call.1} parent=39 // pred_region
          %s360 = sand.u32 %s104, 1
          %s361 = sand.u32 %s104, 1
          %s362 = smul.addr %s361, 16
          %s363 = scalar_lea.vmem [#allocation6], %s362
          %s364 = smul.addr %s26, 8
          %s365 = sadd.s32 %s28, %s364
          %s366 = smul.addr %s365, 4
          %s367 = scalar_lea.vmem %s2, %s366
          // Predicated region
          $region53: #{tpu_custom_call.1} parent=51 // pred_check
            _
          $region54: #{tpu_custom_call.1} parent=51 // pred_check_branch
            %369 = sbr.rel (0) target = $region56
          $region55: #{tpu_custom_call.1} parent=51 // pred_region
            // Predicated region
            $region57: #{tpu_custom_call.1} parent=55 // pred_check
              _
            $region58: #{tpu_custom_call.1} parent=55 // pred_check_branch
              %371 = sbr.rel target = $region60
            $region59: #{tpu_custom_call.1} parent=55 // pred_region
              // Predicated region
              $region72: #{tpu_custom_call.1} parent=59 // pred_check
                _
              $region73: #{tpu_custom_call.1} parent=59 // pred_check_branch
                %392 = sbr.rel (0) target = $region75
              $region74: #{tpu_custom_call.1} parent=59 // pred_region
                loop: start=0, step=1, limit=1
                $region76: #{tpu_custom_call.1} parent=74 // loop_pre_header
                  _
                $region77: #{tpu_custom_call.1} parent=74 // loop_header
                  %s394 = sphi 0, %s398
                  %p395 = scmp.ge.s32.totalorder %s394, 1
                  %s399 = sphi %s367, %s367
                  %s400 = sphi %s363, %s363
                $region78: #{tpu_custom_call.1} parent=74 // loop_header_branch
                  %397 = sbr.rel (%p395) target = $region82
                $region79: #{tpu_custom_call.1} parent=74 // loop_body
                  _
                $region80: #{tpu_custom_call.1} parent=74 // loop_footer
                  %s398 = sadd.s32 1, %s394
                $region81: #{tpu_custom_call.1} parent=74 // loop_footer_branch
                  %393 = sbr.rel target = $region77
                $region82: #{tpu_custom_call.1} parent=74 // loop_exit
                  _
                loop: start=0, step=1, limit=1
                $region83: #{tpu_custom_call.1} parent=74 // loop_pre_header
                  _
                $region84: #{tpu_custom_call.1} parent=74 // loop_header
                  %s403 = sphi 0, %s407
                  %p404 = scmp.ge.s32.totalorder %s403, 1
                  %s408 = sphi %s367, %s367
                  %s409 = sphi %s363, %s363
                $region85: #{tpu_custom_call.1} parent=74 // loop_header_branch
                  %406 = sbr.rel (%p404) target = $region89
                $region86: #{tpu_custom_call.1} parent=74 // loop_body
                  %v410 = vld [vmem:[%s408] sm:$0xf]
                  %411 = vst [vmem:[%s409] sm:$0xf] %v410
                  %v412 = vld [vmem:[%s408 + $0x8] sm:$0xf]
                  %413 = vst [vmem:[%s409 + $0x4] sm:$0xf] %v412
                  %v414 = vld [vmem:[%s408 + $0x10] sm:$0xf]
                  %415 = vst [vmem:[%s409 + $0x8] sm:$0xf] %v414
                  %v416 = vld [vmem:[%s408 + $0x18] sm:$0xf]
                  %417 = vst [vmem:[%s409 + $0xc] sm:$0xf] %v416
                $region87: #{tpu_custom_call.1} parent=74 // loop_footer
                  %s407 = sadd.s32 1, %s403
                $region88: #{tpu_custom_call.1} parent=74 // loop_footer_branch
                  %402 = sbr.rel target = $region84
                $region89: #{tpu_custom_call.1} parent=74 // loop_exit
                  _
              $region75: #{tpu_custom_call.1} parent=59 // pred_fallthru
                _
            $region60: #{tpu_custom_call.1} parent=55 // pred_fallthru
              _
            // Predicated region
            $region61: #{tpu_custom_call.1} parent=55 // pred_check
              _
            $region62: #{tpu_custom_call.1} parent=55 // pred_check_branch
              %373 = sbr.rel (0) target = $region64
            $region63: #{tpu_custom_call.1} parent=55 // pred_region
              loop: start=0, step=1, limit=1
              $region65: #{tpu_custom_call.1} parent=63 // loop_pre_header
                _
              $region66: #{tpu_custom_call.1} parent=63 // loop_header
                %s376 = sphi 0, %s380
                %p377 = scmp.ge.s32.totalorder %s376, 1
                %s381 = sphi %s367, %s367
                %s382 = sphi %s363, %s363
              $region67: #{tpu_custom_call.1} parent=63 // loop_header_branch
                %379 = sbr.rel (%p377) target = $region71
              $region68: #{tpu_custom_call.1} parent=63 // loop_body
                %v383 = vld [vmem:[%s381] sm:$0xf]
                %384 = vst [vmem:[%s382] sm:$0xf] %v383
                %v385 = vld [vmem:[%s381 + $0x8] sm:$0xf]
                %386 = vst [vmem:[%s382 + $0x4] sm:$0xf] %v385
                %v387 = vld [vmem:[%s381 + $0x10] sm:$0xf]
                %388 = vst [vmem:[%s382 + $0x8] sm:$0xf] %v387
                %v389 = vld [vmem:[%s381 + $0x18] sm:$0xf]
                %390 = vst [vmem:[%s382 + $0xc] sm:$0xf] %v389
              $region69: #{tpu_custom_call.1} parent=63 // loop_footer
                %s380 = sadd.s32 1, %s376
              $region70: #{tpu_custom_call.1} parent=63 // loop_footer_branch
                %375 = sbr.rel target = $region66
              $region71: #{tpu_custom_call.1} parent=63 // loop_exit
                _
            $region64: #{tpu_custom_call.1} parent=55 // pred_fallthru
              _
          $region56: #{tpu_custom_call.1} parent=51 // pred_fallthru
            _
          %418 = vnop
        $region52: #{tpu_custom_call.1} parent=39 // pred_fallthru
          _
        // Predicated region
        $region90: #{tpu_custom_call.1} parent=39 // pred_check
          %p419 = pneg %p142
        $region91: #{tpu_custom_call.1} parent=39 // pred_check_branch
          %421 = sbr.rel (%p419) target = $region93
        $region92: #{tpu_custom_call.1} parent=39 // pred_region
          %s422 = sand.u32 %s132, 1
          %s423 = sand.u32 %s132, 1
          %s424 = smul.addr %s423, 16
          %s425 = scalar_lea.vmem [#allocation7], %s424
          %s426 = smul.addr %s26, 8
          %s427 = sadd.s32 %s28, %s426
          %s428 = smul.addr %s427, 4
          %s429 = scalar_lea.vmem %s3, %s428
          // Predicated region
          $region94: #{tpu_custom_call.1} parent=92 // pred_check
            _
          $region95: #{tpu_custom_call.1} parent=92 // pred_check_branch
            %431 = sbr.rel (0) target = $region97
          $region96: #{tpu_custom_call.1} parent=92 // pred_region
            // Predicated region
            $region98: #{tpu_custom_call.1} parent=96 // pred_check
              _
            $region99: #{tpu_custom_call.1} parent=96 // pred_check_branch
              %433 = sbr.rel target = $region101
            $region100: #{tpu_custom_call.1} parent=96 // pred_region
              // Predicated region
              $region113: #{tpu_custom_call.1} parent=100 // pred_check
                _
              $region114: #{tpu_custom_call.1} parent=100 // pred_check_branch
                %454 = sbr.rel (0) target = $region116
              $region115: #{tpu_custom_call.1} parent=100 // pred_region
                loop: start=0, step=1, limit=1
                $region117: #{tpu_custom_call.1} parent=115 // loop_pre_header
                  _
                $region118: #{tpu_custom_call.1} parent=115 // loop_header
                  %s456 = sphi 0, %s460
                  %p457 = scmp.ge.s32.totalorder %s456, 1
                  %s461 = sphi %s429, %s429
                  %s462 = sphi %s425, %s425
                $region119: #{tpu_custom_call.1} parent=115 // loop_header_branch
                  %459 = sbr.rel (%p457) target = $region123
                $region120: #{tpu_custom_call.1} parent=115 // loop_body
                  _
                $region121: #{tpu_custom_call.1} parent=115 // loop_footer
                  %s460 = sadd.s32 1, %s456
                $region122: #{tpu_custom_call.1} parent=115 // loop_footer_branch
                  %455 = sbr.rel target = $region118
                $region123: #{tpu_custom_call.1} parent=115 // loop_exit
                  _
                loop: start=0, step=1, limit=1
                $region124: #{tpu_custom_call.1} parent=115 // loop_pre_header
                  _
                $region125: #{tpu_custom_call.1} parent=115 // loop_header
                  %s465 = sphi 0, %s469
                  %p466 = scmp.ge.s32.totalorder %s465, 1
                  %s470 = sphi %s429, %s429
                  %s471 = sphi %s425, %s425
                $region126: #{tpu_custom_call.1} parent=115 // loop_header_branch
                  %468 = sbr.rel (%p466) target = $region130
                $region127: #{tpu_custom_call.1} parent=115 // loop_body
                  %v472 = vld [vmem:[%s470] sm:$0xf]
                  %473 = vst [vmem:[%s471] sm:$0xf] %v472
                  %v474 = vld [vmem:[%s470 + $0x8] sm:$0xf]
                  %475 = vst [vmem:[%s471 + $0x4] sm:$0xf] %v474
                  %v476 = vld [vmem:[%s470 + $0x10] sm:$0xf]
                  %477 = vst [vmem:[%s471 + $0x8] sm:$0xf] %v476
                  %v478 = vld [vmem:[%s470 + $0x18] sm:$0xf]
                  %479 = vst [vmem:[%s471 + $0xc] sm:$0xf] %v478
                $region128: #{tpu_custom_call.1} parent=115 // loop_footer
                  %s469 = sadd.s32 1, %s465
                $region129: #{tpu_custom_call.1} parent=115 // loop_footer_branch
                  %464 = sbr.rel target = $region125
                $region130: #{tpu_custom_call.1} parent=115 // loop_exit
                  _
              $region116: #{tpu_custom_call.1} parent=100 // pred_fallthru
                _
            $region101: #{tpu_custom_call.1} parent=96 // pred_fallthru
              _
            // Predicated region
            $region102: #{tpu_custom_call.1} parent=96 // pred_check
              _
            $region103: #{tpu_custom_call.1} parent=96 // pred_check_branch
              %435 = sbr.rel (0) target = $region105
            $region104: #{tpu_custom_call.1} parent=96 // pred_region
              loop: start=0, step=1, limit=1
              $region106: #{tpu_custom_call.1} parent=104 // loop_pre_header
                _
              $region107: #{tpu_custom_call.1} parent=104 // loop_header
                %s438 = sphi 0, %s442
                %p439 = scmp.ge.s32.totalorder %s438, 1
                %s443 = sphi %s429, %s429
                %s444 = sphi %s425, %s425
              $region108: #{tpu_custom_call.1} parent=104 // loop_header_branch
                %441 = sbr.rel (%p439) target = $region112
              $region109: #{tpu_custom_call.1} parent=104 // loop_body
                %v445 = vld [vmem:[%s443] sm:$0xf]
                %446 = vst [vmem:[%s444] sm:$0xf] %v445
                %v447 = vld [vmem:[%s443 + $0x8] sm:$0xf]
                %448 = vst [vmem:[%s444 + $0x4] sm:$0xf] %v447
                %v449 = vld [vmem:[%s443 + $0x10] sm:$0xf]
                %450 = vst [vmem:[%s444 + $0x8] sm:$0xf] %v449
                %v451 = vld [vmem:[%s443 + $0x18] sm:$0xf]
                %452 = vst [vmem:[%s444 + $0xc] sm:$0xf] %v451
              $region110: #{tpu_custom_call.1} parent=104 // loop_footer
                %s442 = sadd.s32 1, %s438
              $region111: #{tpu_custom_call.1} parent=104 // loop_footer_branch
                %437 = sbr.rel target = $region107
              $region112: #{tpu_custom_call.1} parent=104 // loop_exit
                _
            $region105: #{tpu_custom_call.1} parent=96 // pred_fallthru
              _
          $region97: #{tpu_custom_call.1} parent=92 // pred_fallthru
            _
          %480 = vnop
        $region93: #{tpu_custom_call.1} parent=39 // pred_fallthru
          _
      $region40: #{tpu_custom_call.1} parent=5 // pred_fallthru
        _
      %p481 = scmp.le.s32.totalorder 1, %s19
      %p482 = scmp.lt.s32.totalorder %s19, 9
      %p483 = pnand %p481, %p482
      %p484 = pneg %p483
      // Predicated region
      $region131: #{tpu_custom_call.1} parent=5 // pred_check
        _
      $region132: #{tpu_custom_call.1} parent=5 // pred_check_branch
        %486 = sbr.rel (%p483) target = $region134
      $region133: #{tpu_custom_call.1} parent=5 // pred_region
        %s487 = ssub.s32 %s19, 1
        %s488 = sand.u32 %s107, 1
        %s489 = sand.u32 %s107, 1
        %s490 = smul.addr %s489, 16
        %s491 = scalar_lea.vmem [#allocation6], %s490
        // Predicated region
        $region135: #{tpu_custom_call.1} parent=133 // pred_check
          %p492 = pneg %p120
        $region136: #{tpu_custom_call.1} parent=133 // pred_check_branch
          %494 = sbr.rel (%p492) target = $region138
        $region137: #{tpu_custom_call.1} parent=133 // pred_region
          _
        $region138: #{tpu_custom_call.1} parent=133 // pred_fallthru
          _
        %s495 = sand.u32 %s135, 1
        %s496 = sand.u32 %s135, 1
        %s497 = smul.addr %s496, 16
        %s498 = scalar_lea.vmem [#allocation7], %s497
        // Predicated region
        $region139: #{tpu_custom_call.1} parent=133 // pred_check
          %p499 = pneg %p148
        $region140: #{tpu_custom_call.1} parent=133 // pred_check_branch
          %501 = sbr.rel (%p499) target = $region142
        $region141: #{tpu_custom_call.1} parent=133 // pred_region
          _
        $region142: #{tpu_custom_call.1} parent=133 // pred_fallthru
          _
        %p502 = scmp.lt.s32.totalorder %s29, 1
        %s503 = scalar_select %p502, %s29, 1
        %p504 = scmp.lt.s32.totalorder %s30, 1
        %s505 = scalar_select %p504, %s30, 1
        %s506 = smul.addr %s503, 2
        %s507 = sadd.s32 %s505, %s506
        %s508 = smul.addr %s507, 8
        %s509 = scalar_lea.vmem %s0, %s508
        %p510 = pneg %p66
        %p511 = pneg %p63
        %p512 = scmp.lt.s32.totalorder %s29, 1
        %s513 = scalar_select %p512, %s29, 1
        %s514 = smul.addr %s513, 8
        %s515 = scalar_lea.vmem %s1, %s514
        %p516 = pneg %p92
        %p517 = pneg %p89
        %s518 = sand.u32 %s107, 1
        %s519 = sand.u32 %s107, 1
        %s520 = smul.addr %s519, 16
        %s521 = scalar_lea.vmem [#allocation6], %s520
        %p522 = pneg %p120
        %p523 = pneg %p117
        %s524 = sand.u32 %s135, 1
        %s525 = sand.u32 %s135, 1
        %s526 = smul.addr %s525, 16
        %s527 = scalar_lea.vmem [#allocation7], %s526
        %p528 = pneg %p148
        %p529 = pneg %p145
        %p530 = pneg %p169
        %p531 = pneg %p166
        %p532 = pneg %p190
        %p533 = pneg %p187
        %p534 = pneg %p211
        %p535 = pneg %p208
        %p536 = pneg %p232
        %p537 = pneg %p229
        %p538 = pneg %p253
        %p539 = pneg %p250
        %p540 = pneg %p274
        %p541 = pneg %p271
        %p542 = pneg %p302
        %p543 = pneg %p299
        %s544 = sand.u32 %s289, 1
        %s545 = scalar_lea.sflag [#allocation9], %s544
        %s546 = sand.u32 %s289, 1
        %s547 = smul.addr %s546, 8
        %s548 = scalar_lea.vmem [#allocation8], %s547
        %p549 = scmp.lt.s32.totalorder %s29, 1
        %s550 = scalar_select %p549, %s29, 1
        %p551 = scmp.lt.s32.totalorder %s30, 1
        %s552 = scalar_select %p551, %s30, 1
        %s553 = smul.addr %s550, 2
        %s554 = sadd.s32 %s552, %s553
        %s555 = smul.addr %s554, 8
        %s556 = scalar_lea.vmem %s0, %s555
        %p557 = scmp.lt.s32.totalorder %s29, 1
        %s558 = scalar_select %p557, %s29, 1
        %s559 = smul.addr %s558, 8
        %s560 = scalar_lea.vmem %s1, %s559
        %v562 = vld [vmem:[%s560] sm:$0x3f]
        %p563 = scmp.eq.s32.totalorder %s31, 0
        // Predicated region
        $region143: #{tpu_custom_call.1} parent=133 // pred_check
          %p564 = pneg %p563
        $region144: #{tpu_custom_call.1} parent=133 // pred_check_branch
          %566 = sbr.rel (%p564) target = $region146
        $region145: #{tpu_custom_call.1} parent=133 // pred_region
          %v567 = vld [vmem:[%s556] sm:$0xff]
          %v568 = vld [vmem:[%s4] sm:$0x1]
          %v569 = vld [vmem:[%s5] sm:$0x1]
          %vm570 = vcmask 261120
          %v571 = vsel %vm570, %v567, 0.0
          %572 = vadd.xlane.f32.xlu0 %v571
          %v573 = vpop.xlane.xlu0 %572
          %v574 = vrcp.pop 32.0
          %v575 = vmul.f32 %v573, %v574
          %v576 = vsub.f32 %v567, %v575
          %v577 = vmul.f32 %v576, %v576
          %v578 = vsel %vm570, %v577, 0.0
          %579 = vadd.xlane.f32.xlu0 %v578
          %v580 = vpop.xlane.xlu0 %579
          %v581 = vmul.f32 %v580, %v574
          %v582 = vadd.f32 %v581, 1e-05
          %v583 = vrsqrt.pop %v582
          %v584 = vmul.f32 %v576, %v583
          %v586 = vlaneseq
          %v587 = vshrl.u32 %v586, 7
          %v588 = vsub.s32 0, %v587
          %v589 = vrot.slane %v568, %v588
          %v591 = vmul.f32 %v584, %v589
          %v593 = vlaneseq
          %v594 = vshrl.u32 %v593, 7
          %v595 = vsub.s32 0, %v594
          %v596 = vrot.slane %v569, %v595
          %v598 = vadd.f32 %v591, %v596
          %v599 = vadd.f32 %v562, 1.0
          %v600 = vlaneseq
          %v601 = vshrl.u32 %v600, 7
          %v602 = vsub.s32 1, %v601
          %v603 = vrot.slane %v599, %v602
          %v604 = vmul.f32 %v598, %v603
          %v605 = vlaneseq
          %v606 = vshrl.u32 %v605, 7
          %v607 = vsub.s32 0, %v606
          %v608 = vrot.slane %v562, %v607
          %v609 = vadd.f32 %v604, %v608
          %v610 = vpack.c.bf16 %v609, %v609
          %v611 = vld [vmem:[%s6] sm:$0xf]
          %v612 = vld [vmem:[%s6 + $0x4] sm:$0xf]
          %v613 = vld [vmem:[%s6 + $0x8] sm:$0xf]
          %v614 = vld [vmem:[%s6 + $0xc] sm:$0xf]
          %v615 = vld [vmem:[%s7] sm:$0x1]
          %v617 = vlaneseq
          %v618 = vshrl.u32 %v617, 7
          %v619 = vsub.s32 0, %v618
          %v620 = vrot.slane %v615, %v619
          %v626 = vunpack.c.l.b16 %v611
          %v627 = vunpack.c.l.b16 %v612
          %v628 = vunpack.c.l.b16 %v613
          %v629 = vunpack.c.l.b16 %v614
          %v630 = vpack.c.b16 %v627, %v626
          %v631 = vpack.c.b16 %v629, %v628
          %v635 = vsel %vm570, %v610, 0
          %637 = vmatprep.subr.bf16.mxu0 0
          %638 = vmatpush1.bf16.msra.mxu0 %v630
          %639 = vmatprep.subr.bf16.mxu0 0
          %640 = vmatpush1.bf16.msra.mxu0 %v631
          %641 = vmatprep.subr.bf16.mxu0 0
          %642 = vmatpush1.bf16.msra.mxu0 0
          %643 = vmatprep.subr.bf16.mxu0 0
          %644 = vmatpush1.bf16.msra.mxu0 0
          %645 = vmatprep.subr.bf16.mxu0 0
          %646 = vmatpush1.bf16.msra.mxu0 0
          %647 = vmatprep.subr.bf16.mxu0 0
          %648 = vmatpush1.bf16.msra.mxu0 0
          %649 = vmatprep.subr.bf16.mxu0 0
          %650 = vmatpush1.bf16.msra.mxu0 0
          %651 = vmatprep.subr.bf16.mxu0 0
          %652 = vmatpush1.bf16.msra.mxu0 0
          %653 = vmatprep.subr.bf16.mxu0 0
          %654 = vmatpush1.bf16.msra.mxu0 0
          %655 = vmatprep.subr.bf16.mxu0 0
          %656 = vmatpush1.bf16.msra.mxu0 0
          %657 = vmatprep.subr.bf16.mxu0 0
          %658 = vmatpush1.bf16.msra.mxu0 0
          %659 = vmatprep.subr.bf16.mxu0 0
          %660 = vmatpush1.bf16.msra.mxu0 0
          %661 = vmatprep.subr.bf16.mxu0 0
          %662 = vmatpush1.bf16.msra.mxu0 0
          %663 = vmatprep.subr.bf16.mxu0 0
          %664 = vmatpush1.bf16.msra.mxu0 0
          %665 = vmatprep.subr.bf16.mxu0 0
          %666 = vmatpush1.bf16.msra.mxu0 0
          %667 = vmatprep.subr.bf16.mxu0 0
          %668 = vmatpush1.bf16.msra.mxu0 0
          %669 = vmatprep.mubr.bf16.mxu0 0
          %670 = vmatmul.mubr.bf16.gmra.mrb[0].mxu0 %v635
          %v671 = vpop.f32.mrb[0].mxu0
          %v672 = vadd.f32 %v620, %v671
          %v673 = vpop.f32.mrb[0].mxu0
          %v674 = vpop.f32.mrb[0].mxu0
          %v675 = vpop.f32.mrb[0].mxu0
          %676 = vdwg.mxu0
          %v677 = vmul.f32 %v672, 0.35355338
          %v678 = vpack.c.bf16 %v677, %v677
          %vm679 = vcmask 60416
          %680 = vst.msk [vmem:[#allocation2] sm:$0xf] %vm679, %v678
          %s681 = scalar_lea.vmem %s6, 16
          %v682 = vld [vmem:[%s681] sm:$0xf]
          %v683 = vld [vmem:[%s681 + $0x4] sm:$0xf]
          %v684 = vld [vmem:[%s681 + $0x8] sm:$0xf]
          %v685 = vld [vmem:[%s681 + $0xc] sm:$0xf]
          %s686 = scalar_lea.vmem %s7, 1
          %v687 = vld [vmem:[%s686] sm:$0x1]
          %v689 = vlaneseq
          %v690 = vshrl.u32 %v689, 7
          %v691 = vsub.s32 0, %v690
          %v692 = vrot.slane %v687, %v691
          %v698 = vunpack.c.l.b16 %v682
          %v699 = vunpack.c.l.b16 %v683
          %v700 = vunpack.c.l.b16 %v684
          %v701 = vunpack.c.l.b16 %v685
          %v702 = vpack.c.b16 %v699, %v698
          %v703 = vpack.c.b16 %v701, %v700
          %706 = vmatprep.subr.bf16.mxu0 0
          %707 = vmatpush1.bf16.msra.mxu0 %v702
          %708 = vmatprep.subr.bf16.mxu0 0
          %709 = vmatpush1.bf16.msra.mxu0 %v703
          %710 = vmatprep.subr.bf16.mxu0 0
          %711 = vmatpush1.bf16.msra.mxu0 0
          %712 = vmatprep.subr.bf16.mxu0 0
          %713 = vmatpush1.bf16.msra.mxu0 0
          %714 = vmatprep.subr.bf16.mxu0 0
          %715 = vmatpush1.bf16.msra.mxu0 0
          %716 = vmatprep.subr.bf16.mxu0 0
          %717 = vmatpush1.bf16.msra.mxu0 0
          %718 = vmatprep.subr.bf16.mxu0 0
          %719 = vmatpush1.bf16.msra.mxu0 0
          %720 = vmatprep.subr.bf16.mxu0 0
          %721 = vmatpush1.bf16.msra.mxu0 0
          %722 = vmatprep.subr.bf16.mxu0 0
          %723 = vmatpush1.bf16.msra.mxu0 0
          %724 = vmatprep.subr.bf16.mxu0 0
          %725 = vmatpush1.bf16.msra.mxu0 0
          %726 = vmatprep.subr.bf16.mxu0 0
          %727 = vmatpush1.bf16.msra.mxu0 0
          %728 = vmatprep.subr.bf16.mxu0 0
          %729 = vmatpush1.bf16.msra.mxu0 0
          %730 = vmatprep.subr.bf16.mxu0 0
          %731 = vmatpush1.bf16.msra.mxu0 0
          %732 = vmatprep.subr.bf16.mxu0 0
          %733 = vmatpush1.bf16.msra.mxu0 0
          %734 = vmatprep.subr.bf16.mxu0 0
          %735 = vmatpush1.bf16.msra.mxu0 0
          %736 = vmatprep.subr.bf16.mxu0 0
          %737 = vmatpush1.bf16.msra.mxu0 0
          %738 = vmatprep.mubr.bf16.mxu0 0
          %739 = vmatmul.mubr.bf16.gmra.mrb[0].mxu0 %v635
          %v740 = vpop.f32.mrb[0].mxu0
          %v741 = vadd.f32 %v692, %v740
          %v742 = vpop.f32.mrb[0].mxu0
          %v743 = vpop.f32.mrb[0].mxu0
          %v744 = vpop.f32.mrb[0].mxu0
          %745 = vdwg.mxu0
          %v746 = vmul.f32 %v741, 0.35355338
          %v747 = vpack.c.bf16 %v746, %v746
          %s748 = scalar_lea.vmem [#allocation2], 4
          %749 = vst.msk [vmem:[%s748] sm:$0xf] %vm679, %v747
          %s750 = scalar_lea.vmem %s6, 32
          %v751 = vld [vmem:[%s750] sm:$0xf]
          %v752 = vld [vmem:[%s750 + $0x4] sm:$0xf]
          %v753 = vld [vmem:[%s750 + $0x8] sm:$0xf]
          %v754 = vld [vmem:[%s750 + $0xc] sm:$0xf]
          %s755 = scalar_lea.vmem %s7, 2
          %v756 = vld [vmem:[%s755] sm:$0x1]
          %v758 = vlaneseq
          %v759 = vshrl.u32 %v758, 7
          %v760 = vsub.s32 0, %v759
          %v761 = vrot.slane %v756, %v760
          %v767 = vunpack.c.l.b16 %v751
          %v768 = vunpack.c.l.b16 %v752
          %v769 = vunpack.c.l.b16 %v753
          %v770 = vunpack.c.l.b16 %v754
          %v771 = vpack.c.b16 %v768, %v767
          %v772 = vpack.c.b16 %v770, %v769
          %775 = vmatprep.subr.bf16.mxu0 0
          %776 = vmatpush1.bf16.msra.mxu0 %v771
          %777 = vmatprep.subr.bf16.mxu0 0
          %778 = vmatpush1.bf16.msra.mxu0 %v772
          %779 = vmatprep.subr.bf16.mxu0 0
          %780 = vmatpush1.bf16.msra.mxu0 0
          %781 = vmatprep.subr.bf16.mxu0 0
          %782 = vmatpush1.bf16.msra.mxu0 0
          %783 = vmatprep.subr.bf16.mxu0 0
          %784 = vmatpush1.bf16.msra.mxu0 0
          %785 = vmatprep.subr.bf16.mxu0 0
          %786 = vmatpush1.bf16.msra.mxu0 0
          %787 = vmatprep.subr.bf16.mxu0 0
          %788 = vmatpush1.bf16.msra.mxu0 0
          %789 = vmatprep.subr.bf16.mxu0 0
          %790 = vmatpush1.bf16.msra.mxu0 0
          %791 = vmatprep.subr.bf16.mxu0 0
          %792 = vmatpush1.bf16.msra.mxu0 0
          %793 = vmatprep.subr.bf16.mxu0 0
          %794 = vmatpush1.bf16.msra.mxu0 0
          %795 = vmatprep.subr.bf16.mxu0 0
          %796 = vmatpush1.bf16.msra.mxu0 0
          %797 = vmatprep.subr.bf16.mxu0 0
          %798 = vmatpush1.bf16.msra.mxu0 0
          %799 = vmatprep.subr.bf16.mxu0 0
          %800 = vmatpush1.bf16.msra.mxu0 0
          %801 = vmatprep.subr.bf16.mxu0 0
          %802 = vmatpush1.bf16.msra.mxu0 0
          %803 = vmatprep.subr.bf16.mxu0 0
          %804 = vmatpush1.bf16.msra.mxu0 0
          %805 = vmatprep.subr.bf16.mxu0 0
          %806 = vmatpush1.bf16.msra.mxu0 0
          %807 = vmatprep.mubr.bf16.mxu0 0
          %808 = vmatmul.mubr.bf16.gmra.mrb[0].mxu0 %v635
          %v809 = vpop.f32.mrb[0].mxu0
          %v810 = vadd.f32 %v761, %v809
          %v811 = vpop.f32.mrb[0].mxu0
          %v812 = vpop.f32.mrb[0].mxu0
          %v813 = vpop.f32.mrb[0].mxu0
          %814 = vdwg.mxu0
          %v815 = vmul.f32 %v810, 0.35355338
          %v816 = vpack.c.bf16 %v815, %v815
          %s817 = scalar_lea.vmem [#allocation2], 8
          %818 = vst.msk [vmem:[%s817] sm:$0xf] %vm679, %v816
          %s819 = scalar_lea.vmem %s6, 48
          %v820 = vld [vmem:[%s819] sm:$0xf]
          %v821 = vld [vmem:[%s819 + $0x4] sm:$0xf]
          %v822 = vld [vmem:[%s819 + $0x8] sm:$0xf]
          %v823 = vld [vmem:[%s819 + $0xc] sm:$0xf]
          %s824 = scalar_lea.vmem %s7, 3
          %v825 = vld [vmem:[%s824] sm:$0x1]
          %v827 = vlaneseq
          %v828 = vshrl.u32 %v827, 7
          %v829 = vsub.s32 0, %v828
          %v830 = vrot.slane %v825, %v829
          %v836 = vunpack.c.l.b16 %v820
          %v837 = vunpack.c.l.b16 %v821
          %v838 = vunpack.c.l.b16 %v822
          %v839 = vunpack.c.l.b16 %v823
          %v840 = vpack.c.b16 %v837, %v836
          %v841 = vpack.c.b16 %v839, %v838
          %844 = vmatprep.subr.bf16.mxu0 0
          %845 = vmatpush1.bf16.msra.mxu0 %v840
          %846 = vmatprep.subr.bf16.mxu0 0
          %847 = vmatpush1.bf16.msra.mxu0 %v841
          %848 = vmatprep.subr.bf16.mxu0 0
          %849 = vmatpush1.bf16.msra.mxu0 0
          %850 = vmatprep.subr.bf16.mxu0 0
          %851 = vmatpush1.bf16.msra.mxu0 0
          %852 = vmatprep.subr.bf16.mxu0 0
          %853 = vmatpush1.bf16.msra.mxu0 0
          %854 = vmatprep.subr.bf16.mxu0 0
          %855 = vmatpush1.bf16.msra.mxu0 0
          %856 = vmatprep.subr.bf16.mxu0 0
          %857 = vmatpush1.bf16.msra.mxu0 0
          %858 = vmatprep.subr.bf16.mxu0 0
          %859 = vmatpush1.bf16.msra.mxu0 0
          %860 = vmatprep.subr.bf16.mxu0 0
          %861 = vmatpush1.bf16.msra.mxu0 0
          %862 = vmatprep.subr.bf16.mxu0 0
          %863 = vmatpush1.bf16.msra.mxu0 0
          %864 = vmatprep.subr.bf16.mxu0 0
          %865 = vmatpush1.bf16.msra.mxu0 0
          %866 = vmatprep.subr.bf16.mxu0 0
          %867 = vmatpush1.bf16.msra.mxu0 0
          %868 = vmatprep.subr.bf16.mxu0 0
          %869 = vmatpush1.bf16.msra.mxu0 0
          %870 = vmatprep.subr.bf16.mxu0 0
          %871 = vmatpush1.bf16.msra.mxu0 0
          %872 = vmatprep.subr.bf16.mxu0 0
          %873 = vmatpush1.bf16.msra.mxu0 0
          %874 = vmatprep.subr.bf16.mxu0 0
          %875 = vmatpush1.bf16.msra.mxu0 0
          %876 = vmatprep.mubr.bf16.mxu0 0
          %877 = vmatmul.mubr.bf16.gmra.mrb[0].mxu0 %v635
          %v878 = vpop.f32.mrb[0].mxu0
          %v879 = vadd.f32 %v830, %v878
          %v880 = vpop.f32.mrb[0].mxu0
          %v881 = vpop.f32.mrb[0].mxu0
          %v882 = vpop.f32.mrb[0].mxu0
          %883 = vdwg.mxu0
          %v884 = vmul.f32 %v879, 0.35355338
          %v885 = vpack.c.bf16 %v884, %v884
          %s886 = scalar_lea.vmem [#allocation2], 12
          %887 = vst.msk [vmem:[%s886] sm:$0xf] %vm679, %v885
          %vm888 = vcmask 7168
          %889 = vst.msk [vmem:[#allocation3] sm:$0xff] %vm888, -inf
          %890 = vst.msk [vmem:[#allocation3 + $0x8] sm:$0xff] %vm888, -inf
          %891 = vst.msk [vmem:[#allocation3 + $0x10] sm:$0xff] %vm888, -inf
          %892 = vst.msk [vmem:[#allocation3 + $0x18] sm:$0xff] %vm888, -inf
          %893 = vst.msk [vmem:[#allocation4] sm:$0xff] %vm888, 0.0
          %894 = vst.msk [vmem:[#allocation4 + $0x8] sm:$0xff] %vm888, 0.0
          %895 = vst.msk [vmem:[#allocation4 + $0x10] sm:$0xff] %vm888, 0.0
          %896 = vst.msk [vmem:[#allocation4 + $0x18] sm:$0xff] %vm888, 0.0
          %vm897 = vcmask 64512
          %898 = vst.msk [vmem:[#allocation5] sm:$0xff] %vm897, 0.0
          %899 = vst.msk [vmem:[#allocation5 + $0x8] sm:$0xff] %vm897, 0.0
          %900 = vst.msk [vmem:[#allocation5 + $0x10] sm:$0xff] %vm897, 0.0
          %901 = vst.msk [vmem:[#allocation5 + $0x18] sm:$0xff] %vm897, 0.0
        $region146: #{tpu_custom_call.1} parent=133 // pred_fallthru
          _
        %v902 = vld [vmem:[#allocation2] sm:$0xf]
        %v903 = vld [vmem:[#allocation2 + $0x4] sm:$0xf]
        %v904 = vld [vmem:[#allocation2 + $0x8] sm:$0xf]
        %v905 = vld [vmem:[#allocation2 + $0xc] sm:$0xf]
        %v906 = vld [vmem:[%s491] sm:$0xf]
        %v907 = vld [vmem:[%s491 + $0x4] sm:$0xf]
        %v908 = vld [vmem:[%s491 + $0x8] sm:$0xf]
        %v909 = vld [vmem:[%s491 + $0xc] sm:$0xf]
        %vm910 = vcmask 64512
        %v912 = vsel %vm910, %v902, 0
        %v915 = vsel %vm910, %v906, 0
        %917 = vmatprep.subr.bf16.mxu0 0
        %918 = vmatpush1.bf16.xpose.msra.mxu0 %v915
        %919 = vmatprep.subr.bf16.mxu0 0
        %920 = vmatpush1.bf16.xpose.msra.mxu0 0
        %921 = vmatprep.subr.bf16.mxu0 0
        %922 = vmatpush1.bf16.xpose.msra.mxu0 0
        %923 = vmatprep.subr.bf16.mxu0 0
        %924 = vmatpush1.bf16.xpose.msra.mxu0 0
        %925 = vmatprep.subr.bf16.mxu0 0
        %926 = vmatpush1.bf16.xpose.msra.mxu0 0
        %927 = vmatprep.subr.bf16.mxu0 0
        %928 = vmatpush1.bf16.xpose.msra.mxu0 0
        %929 = vmatprep.subr.bf16.mxu0 0
        %930 = vmatpush1.bf16.xpose.msra.mxu0 0
        %931 = vmatprep.subr.bf16.mxu0 0
        %932 = vmatpush1.bf16.xpose.msra.mxu0 0
        %933 = vmatprep.subr.bf16.mxu0 0
        %934 = vmatpush1.bf16.xpose.msra.mxu0 0
        %935 = vmatprep.subr.bf16.mxu0 0
        %936 = vmatpush1.bf16.xpose.msra.mxu0 0
        %937 = vmatprep.subr.bf16.mxu0 0
        %938 = vmatpush1.bf16.xpose.msra.mxu0 0
        %939 = vmatprep.subr.bf16.mxu0 0
        %940 = vmatpush1.bf16.xpose.msra.mxu0 0
        %941 = vmatprep.subr.bf16.mxu0 0
        %942 = vmatpush1.bf16.xpose.msra.mxu0 0
        %943 = vmatprep.subr.bf16.mxu0 0
        %944 = vmatpush1.bf16.xpose.msra.mxu0 0
        %945 = vmatprep.subr.bf16.mxu0 0
        %946 = vmatpush1.bf16.xpose.msra.mxu0 0
        %947 = vmatprep.subr.bf16.mxu0 0
        %948 = vmatpush1.bf16.xpose.msra.mxu0 0
        %949 = vmatprep.mubr.bf16.mxu0 0
        %950 = vmatmul.mubr.bf16.gmra.mrb[0].mxu0 %v912
        %v951 = vpop.f32.mrb[0].mxu0
        %v952 = vadd.f32 0.0, %v951
        %v953 = vpop.f32.mrb[0].mxu0
        %v954 = vpop.f32.mrb[0].mxu0
        %v955 = vpop.f32.mrb[0].mxu0
        %956 = vdwg.mxu0
        %v958 = vsel %vm910, %v903, 0
        %v961 = vsel %vm910, %v907, 0
        %963 = vmatprep.subr.bf16.mxu0 0
        %964 = vmatpush1.bf16.xpose.msra.mxu0 %v961
        %965 = vmatprep.subr.bf16.mxu0 0
        %966 = vmatpush1.bf16.xpose.msra.mxu0 0
        %967 = vmatprep.subr.bf16.mxu0 0
        %968 = vmatpush1.bf16.xpose.msra.mxu0 0
        %969 = vmatprep.subr.bf16.mxu0 0
        %970 = vmatpush1.bf16.xpose.msra.mxu0 0
        %971 = vmatprep.subr.bf16.mxu0 0
        %972 = vmatpush1.bf16.xpose.msra.mxu0 0
        %973 = vmatprep.subr.bf16.mxu0 0
        %974 = vmatpush1.bf16.xpose.msra.mxu0 0
        %975 = vmatprep.subr.bf16.mxu0 0
        %976 = vmatpush1.bf16.xpose.msra.mxu0 0
        %977 = vmatprep.subr.bf16.mxu0 0
        %978 = vmatpush1.bf16.xpose.msra.mxu0 0
        %979 = vmatprep.subr.bf16.mxu0 0
        %980 = vmatpush1.bf16.xpose.msra.mxu0 0
        %981 = vmatprep.subr.bf16.mxu0 0
        %982 = vmatpush1.bf16.xpose.msra.mxu0 0
        %983 = vmatprep.subr.bf16.mxu0 0
        %984 = vmatpush1.bf16.xpose.msra.mxu0 0
        %985 = vmatprep.subr.bf16.mxu0 0
        %986 = vmatpush1.bf16.xpose.msra.mxu0 0
        %987 = vmatprep.subr.bf16.mxu0 0
        %988 = vmatpush1.bf16.xpose.msra.mxu0 0
        %989 = vmatprep.subr.bf16.mxu0 0
        %990 = vmatpush1.bf16.xpose.msra.mxu0 0
        %991 = vmatprep.subr.bf16.mxu0 0
        %992 = vmatpush1.bf16.xpose.msra.mxu0 0
        %993 = vmatprep.subr.bf16.mxu0 0
        %994 = vmatpush1.bf16.xpose.msra.mxu0 0
        %995 = vmatprep.mubr.bf16.mxu0 0
        %996 = vmatmul.mubr.bf16.gmra.mrb[0].mxu0 %v958
        %v997 = vpop.f32.mrb[0].mxu0
        %v998 = vadd.f32 0.0, %v997
        %v999 = vpop.f32.mrb[0].mxu0
        %v1000 = vpop.f32.mrb[0].mxu0
        %v1001 = vpop.f32.mrb[0].mxu0
        %1002 = vdwg.mxu0
        %v1004 = vsel %vm910, %v904, 0
        %v1007 = vsel %vm910, %v908, 0
        %1009 = vmatprep.subr.bf16.mxu0 0
        %1010 = vmatpush1.bf16.xpose.msra.mxu0 %v1007
        %1011 = vmatprep.subr.bf16.mxu0 0
        %1012 = vmatpush1.bf16.xpose.msra.mxu0 0
        %1013 = vmatprep.subr.bf16.mxu0 0
        %1014 = vmatpush1.bf16.xpose.msra.mxu0 0
        %1015 = vmatprep.subr.bf16.mxu0 0
        %1016 = vmatpush1.bf16.xpose.msra.mxu0 0
        %1017 = vmatprep.subr.bf16.mxu0 0
        %1018 = vmatpush1.bf16.xpose.msra.mxu0 0
        %1019 = vmatprep.subr.bf16.mxu0 0
        %1020 = vmatpush1.bf16.xpose.msra.mxu0 0
        %1021 = vmatprep.subr.bf16.mxu0 0
        %1022 = vmatpush1.bf16.xpose.msra.mxu0 0
        %1023 = vmatprep.subr.bf16.mxu0 0
        %1024 = vmatpush1.bf16.xpose.msra.mxu0 0
        %1025 = vmatprep.subr.bf16.mxu0 0
        %1026 = vmatpush1.bf16.xpose.msra.mxu0 0
        %1027 = vmatprep.subr.bf16.mxu0 0
        %1028 = vmatpush1.bf16.xpose.msra.mxu0 0
        %1029 = vmatprep.subr.bf16.mxu0 0
        %1030 = vmatpush1.bf16.xpose.msra.mxu0 0
        %1031 = vmatprep.subr.bf16.mxu0 0
        %1032 = vmatpush1.bf16.xpose.msra.mxu0 0
        %1033 = vmatprep.subr.bf16.mxu0 0
        %1034 = vmatpush1.bf16.xpose.msra.mxu0 0
        %1035 = vmatprep.subr.bf16.mxu0 0
        %1036 = vmatpush1.bf16.xpose.msra.mxu0 0
        %1037 = vmatprep.subr.bf16.mxu0 0
        %1038 = vmatpush1.bf16.xpose.msra.mxu0 0
        %1039 = vmatprep.subr.bf16.mxu0 0
        %1040 = vmatpush1.bf16.xpose.msra.mxu0 0
        %1041 = vmatprep.mubr.bf16.mxu0 0
        %1042 = vmatmul.mubr.bf16.gmra.mrb[0].mxu0 %v1004
        %v1043 = vpop.f32.mrb[0].mxu0
        %v1044 = vadd.f32 0.0, %v1043
        %v1045 = vpop.f32.mrb[0].mxu0
        %v1046 = vpop.f32.mrb[0].mxu0
        %v1047 = vpop.f32.mrb[0].mxu0
        %1048 = vdwg.mxu0
        %v1050 = vsel %vm910, %v905, 0
        %v1053 = vsel %vm910, %v909, 0
        %1055 = vmatprep.subr.bf16.mxu0 0
        %1056 = vmatpush1.bf16.xpose.msra.mxu0 %v1053
        %1057 = vmatprep.subr.bf16.mxu0 0
        %1058 = vmatpush1.bf16.xpose.msra.mxu0 0
        %1059 = vmatprep.subr.bf16.mxu0 0
        %1060 = vmatpush1.bf16.xpose.msra.mxu0 0
        %1061 = vmatprep.subr.bf16.mxu0 0
        %1062 = vmatpush1.bf16.xpose.msra.mxu0 0
        %1063 = vmatprep.subr.bf16.mxu0 0
        %1064 = vmatpush1.bf16.xpose.msra.mxu0 0
        %1065 = vmatprep.subr.bf16.mxu0 0
        %1066 = vmatpush1.bf16.xpose.msra.mxu0 0
        %1067 = vmatprep.subr.bf16.mxu0 0
        %1068 = vmatpush1.bf16.xpose.msra.mxu0 0
        %1069 = vmatprep.subr.bf16.mxu0 0
        %1070 = vmatpush1.bf16.xpose.msra.mxu0 0
        %1071 = vmatprep.subr.bf16.mxu0 0
        %1072 = vmatpush1.bf16.xpose.msra.mxu0 0
        %1073 = vmatprep.subr.bf16.mxu0 0
        %1074 = vmatpush1.bf16.xpose.msra.mxu0 0
        %1075 = vmatprep.subr.bf16.mxu0 0
        %1076 = vmatpush1.bf16.xpose.msra.mxu0 0
        %1077 = vmatprep.subr.bf16.mxu0 0
        %1078 = vmatpush1.bf16.xpose.msra.mxu0 0
        %1079 = vmatprep.subr.bf16.mxu0 0
        %1080 = vmatpush1.bf16.xpose.msra.mxu0 0
        %1081 = vmatprep.subr.bf16.mxu0 0
        %1082 = vmatpush1.bf16.xpose.msra.mxu0 0
        %1083 = vmatprep.subr.bf16.mxu0 0
        %1084 = vmatpush1.bf16.xpose.msra.mxu0 0
        %1085 = vmatprep.subr.bf16.mxu0 0
        %1086 = vmatpush1.bf16.xpose.msra.mxu0 0
        %1087 = vmatprep.mubr.bf16.mxu0 0
        %1088 = vmatmul.mubr.bf16.gmra.mrb[0].mxu0 %v1050
        %v1089 = vpop.f32.mrb[0].mxu0
        %v1090 = vadd.f32 0.0, %v1089
        %v1091 = vpop.f32.mrb[0].mxu0
        %v1092 = vpop.f32.mrb[0].mxu0
        %v1093 = vpop.f32.mrb[0].mxu0
        %1094 = vdwg.mxu0
        %v1095 = vld [vmem:[#allocation3] sm:$0xff]
        %v1096 = vld [vmem:[#allocation3 + $0x8] sm:$0xff]
        %v1097 = vld [vmem:[#allocation3 + $0x10] sm:$0xff]
        %v1098 = vld [vmem:[#allocation3 + $0x18] sm:$0xff]
        %v1099 = vsel %vm910, %v952, -inf
        %1100 = vmax.xlane.f32.xlu0 %v1099
        %v1101 = vpop.xlane.xlu0 %1100
        %v1102 = vsel %vm910, %v998, -inf
        %1103 = vmax.xlane.f32.xlu0 %v1102
        %v1104 = vpop.xlane.xlu0 %1103
        %v1105 = vsel %vm910, %v1044, -inf
        %1106 = vmax.xlane.f32.xlu0 %v1105
        %v1107 = vpop.xlane.xlu0 %1106
        %v1108 = vsel %vm910, %v1090, -inf
        %1109 = vmax.xlane.f32.xlu0 %v1108
        %v1110 = vpop.xlane.xlu0 %1109
        %v1111 = vmax.f32 %v1095, %v1101
        %v1112 = vmax.f32 %v1096, %v1104
        %v1113 = vmax.f32 %v1097, %v1107
        %v1114 = vmax.f32 %v1098, %v1110
        %v1115 = vsub.f32 %v1095, %v1111
        %v1116 = vsub.f32 %v1096, %v1112
        %v1117 = vsub.f32 %v1097, %v1113
        %v1118 = vsub.f32 %v1098, %v1114
        %v1119 = vmul.f32 %v1115, 1.442695
        %v1120 = vpow.pop %v1119
        %v1121 = vmul.f32 %v1116, 1.442695
        %v1122 = vpow.pop %v1121
        %v1123 = vmul.f32 %v1117, 1.442695
        %v1124 = vpow.pop %v1123
        %v1125 = vmul.f32 %v1118, 1.442695
        %v1126 = vpow.pop %v1125
        %1128 = vset.pattern.permute.xlu0 0
        %1129 = vperm.xlu0 %1128, %v1111
        %v1130 = vpop.permute.xlu0 %1129
        %1133 = vset.pattern.permute.xlu0 0
        %1134 = vperm.xlu0 %1133, %v1112
        %v1135 = vpop.permute.xlu0 %1134
        %1138 = vset.pattern.permute.xlu0 0
        %1139 = vperm.xlu0 %1138, %v1113
        %v1140 = vpop.permute.xlu0 %1139
        %1143 = vset.pattern.permute.xlu0 0
        %1144 = vperm.xlu0 %1143, %v1114
        %v1145 = vpop.permute.xlu0 %1144
        %v1147 = vsub.f32 %v952, %v1130
        %v1148 = vsub.f32 %v998, %v1135
        %v1149 = vsub.f32 %v1044, %v1140
        %v1150 = vsub.f32 %v1090, %v1145
        %v1151 = vmul.f32 %v1147, 1.442695
        %v1152 = vpow.pop %v1151
        %v1153 = vmul.f32 %v1148, 1.442695
        %v1154 = vpow.pop %v1153
        %v1155 = vmul.f32 %v1149, 1.442695
        %v1156 = vpow.pop %v1155
        %v1157 = vmul.f32 %v1150, 1.442695
        %v1158 = vpow.pop %v1157
        %v1159 = vld [vmem:[#allocation4] sm:$0xff]
        %v1160 = vld [vmem:[#allocation4 + $0x8] sm:$0xff]
        %v1161 = vld [vmem:[#allocation4 + $0x10] sm:$0xff]
        %v1162 = vld [vmem:[#allocation4 + $0x18] sm:$0xff]
        %v1163 = vmul.f32 %v1120, %v1159
        %v1164 = vmul.f32 %v1122, %v1160
        %v1165 = vmul.f32 %v1124, %v1161
        %v1166 = vmul.f32 %v1126, %v1162
        %v1167 = vsel %vm910, %v1152, 0.0
        %1168 = vadd.xlane.f32.xlu0 %v1167
        %v1169 = vpop.xlane.xlu0 %1168
        %v1170 = vsel %vm910, %v1154, 0.0
        %1171 = vadd.xlane.f32.xlu0 %v1170
        %v1172 = vpop.xlane.xlu0 %1171
        %v1173 = vsel %vm910, %v1156, 0.0
        %1174 = vadd.xlane.f32.xlu0 %v1173
        %v1175 = vpop.xlane.xlu0 %1174
        %v1176 = vsel %vm910, %v1158, 0.0
        %1177 = vadd.xlane.f32.xlu0 %v1176
        %v1178 = vpop.xlane.xlu0 %1177
        %v1179 = vadd.f32 %v1163, %v1169
        %v1180 = vadd.f32 %v1164, %v1172
        %v1181 = vadd.f32 %v1165, %v1175
        %v1182 = vadd.f32 %v1166, %v1178
        %vm1183 = vcmask 7168
        %1184 = vst.msk [vmem:[#allocation4] sm:$0xff] %vm1183, %v1179
        %1185 = vst.msk [vmem:[#allocation4 + $0x8] sm:$0xff] %vm1183, %v1180
        %1186 = vst.msk [vmem:[#allocation4 + $0x10] sm:$0xff] %vm1183, %v1181
        %1187 = vst.msk [vmem:[#allocation4 + $0x18] sm:$0xff] %vm1183, %v1182
        %v1188 = vld [vmem:[#allocation5] sm:$0xff]
        %v1189 = vld [vmem:[#allocation5 + $0x8] sm:$0xff]
        %v1190 = vld [vmem:[#allocation5 + $0x10] sm:$0xff]
        %v1191 = vld [vmem:[#allocation5 + $0x18] sm:$0xff]
        %1193 = vset.pattern.permute.xlu0 0
        %1194 = vperm.xlu0 %1193, %v1120
        %v1195 = vpop.permute.xlu0 %1194
        %1198 = vset.pattern.permute.xlu0 0
        %1199 = vperm.xlu0 %1198, %v1122
        %v1200 = vpop.permute.xlu0 %1199
        %1203 = vset.pattern.permute.xlu0 0
        %1204 = vperm.xlu0 %1203, %v1124
        %v1205 = vpop.permute.xlu0 %1204
        %1208 = vset.pattern.permute.xlu0 0
        %1209 = vperm.xlu0 %1208, %v1126
        %v1210 = vpop.permute.xlu0 %1209
        %v1212 = vmul.f32 %v1195, %v1188
        %v1213 = vmul.f32 %v1200, %v1189
        %v1214 = vmul.f32 %v1205, %v1190
        %v1215 = vmul.f32 %v1210, %v1191
        %v1216 = vpack.c.bf16 %v1152, %v1152
        %v1217 = vpack.c.bf16 %v1154, %v1154
        %v1218 = vpack.c.bf16 %v1156, %v1156
        %v1219 = vpack.c.bf16 %v1158, %v1158
        %v1220 = vld [vmem:[%s498] sm:$0xf]
        %v1221 = vld [vmem:[%s498 + $0x4] sm:$0xf]
        %v1222 = vld [vmem:[%s498 + $0x8] sm:$0xf]
        %v1223 = vld [vmem:[%s498 + $0xc] sm:$0xf]
        %v1225 = vsel %vm910, %v1216, 0
        %vm1227 = vcmask 1043456
        %v1229 = vsel %vm1227, %v1220, 0
        %1231 = vmatprep.subr.bf16.mxu0 0
        %1232 = vmatpush1.bf16.msra.mxu0 %v1229
        %1233 = vmatprep.subr.bf16.mxu0 0
        %1234 = vmatpush1.bf16.msra.mxu0 0
        %1235 = vmatprep.subr.bf16.mxu0 0
        %1236 = vmatpush1.bf16.msra.mxu0 0
        %1237 = vmatprep.subr.bf16.mxu0 0
        %1238 = vmatpush1.bf16.msra.mxu0 0
        %1239 = vmatprep.subr.bf16.mxu0 0
        %1240 = vmatpush1.bf16.msra.mxu0 0
        %1241 = vmatprep.subr.bf16.mxu0 0
        %1242 = vmatpush1.bf16.msra.mxu0 0
        %1243 = vmatprep.subr.bf16.mxu0 0
        %1244 = vmatpush1.bf16.msra.mxu0 0
        %1245 = vmatprep.subr.bf16.mxu0 0
        %1246 = vmatpush1.bf16.msra.mxu0 0
        %1247 = vmatprep.subr.bf16.mxu0 0
        %1248 = vmatpush1.bf16.msra.mxu0 0
        %1249 = vmatprep.subr.bf16.mxu0 0
        %1250 = vmatpush1.bf16.msra.mxu0 0
        %1251 = vmatprep.subr.bf16.mxu0 0
        %1252 = vmatpush1.bf16.msra.mxu0 0
        %1253 = vmatprep.subr.bf16.mxu0 0
        %1254 = vmatpush1.bf16.msra.mxu0 0
        %1255 = vmatprep.subr.bf16.mxu0 0
        %1256 = vmatpush1.bf16.msra.mxu0 0
        %1257 = vmatprep.subr.bf16.mxu0 0
        %1258 = vmatpush1.bf16.msra.mxu0 0
        %1259 = vmatprep.subr.bf16.mxu0 0
        %1260 = vmatpush1.bf16.msra.mxu0 0
        %1261 = vmatprep.subr.bf16.mxu0 0
        %1262 = vmatpush1.bf16.msra.mxu0 0
        %1263 = vmatprep.mubr.bf16.mxu0 0
        %1264 = vmatmul.mubr.bf16.gmra.mrb[0].mxu0 %v1225
        %v1265 = vpop.f32.mrb[0].mxu0
        %v1266 = vadd.f32 0.0, %v1265
        %v1267 = vpop.f32.mrb[0].mxu0
        %v1268 = vpop.f32.mrb[0].mxu0
        %v1269 = vpop.f32.mrb[0].mxu0
        %1270 = vdwg.mxu0
        %v1272 = vsel %vm910, %v1217, 0
        %v1275 = vsel %vm1227, %v1221, 0
        %1277 = vmatprep.subr.bf16.mxu0 0
        %1278 = vmatpush1.bf16.msra.mxu0 %v1275
        %1279 = vmatprep.subr.bf16.mxu0 0
        %1280 = vmatpush1.bf16.msra.mxu0 0
        %1281 = vmatprep.subr.bf16.mxu0 0
        %1282 = vmatpush1.bf16.msra.mxu0 0
        %1283 = vmatprep.subr.bf16.mxu0 0
        %1284 = vmatpush1.bf16.msra.mxu0 0
        %1285 = vmatprep.subr.bf16.mxu0 0
        %1286 = vmatpush1.bf16.msra.mxu0 0
        %1287 = vmatprep.subr.bf16.mxu0 0
        %1288 = vmatpush1.bf16.msra.mxu0 0
        %1289 = vmatprep.subr.bf16.mxu0 0
        %1290 = vmatpush1.bf16.msra.mxu0 0
        %1291 = vmatprep.subr.bf16.mxu0 0
        %1292 = vmatpush1.bf16.msra.mxu0 0
        %1293 = vmatprep.subr.bf16.mxu0 0
        %1294 = vmatpush1.bf16.msra.mxu0 0
        %1295 = vmatprep.subr.bf16.mxu0 0
        %1296 = vmatpush1.bf16.msra.mxu0 0
        %1297 = vmatprep.subr.bf16.mxu0 0
        %1298 = vmatpush1.bf16.msra.mxu0 0
        %1299 = vmatprep.subr.bf16.mxu0 0
        %1300 = vmatpush1.bf16.msra.mxu0 0
        %1301 = vmatprep.subr.bf16.mxu0 0
        %1302 = vmatpush1.bf16.msra.mxu0 0
        %1303 = vmatprep.subr.bf16.mxu0 0
        %1304 = vmatpush1.bf16.msra.mxu0 0
        %1305 = vmatprep.subr.bf16.mxu0 0
        %1306 = vmatpush1.bf16.msra.mxu0 0
        %1307 = vmatprep.subr.bf16.mxu0 0
        %1308 = vmatpush1.bf16.msra.mxu0 0
        %1309 = vmatprep.mubr.bf16.mxu0 0
        %1310 = vmatmul.mubr.bf16.gmra.mrb[0].mxu0 %v1272
        %v1311 = vpop.f32.mrb[0].mxu0
        %v1312 = vadd.f32 0.0, %v1311
        %v1313 = vpop.f32.mrb[0].mxu0
        %v1314 = vpop.f32.mrb[0].mxu0
        %v1315 = vpop.f32.mrb[0].mxu0
        %1316 = vdwg.mxu0
        %v1318 = vsel %vm910, %v1218, 0
        %v1321 = vsel %vm1227, %v1222, 0
        %1323 = vmatprep.subr.bf16.mxu0 0
        %1324 = vmatpush1.bf16.msra.mxu0 %v1321
        %1325 = vmatprep.subr.bf16.mxu0 0
        %1326 = vmatpush1.bf16.msra.mxu0 0
        %1327 = vmatprep.subr.bf16.mxu0 0
        %1328 = vmatpush1.bf16.msra.mxu0 0
        %1329 = vmatprep.subr.bf16.mxu0 0
        %1330 = vmatpush1.bf16.msra.mxu0 0
        %1331 = vmatprep.subr.bf16.mxu0 0
        %1332 = vmatpush1.bf16.msra.mxu0 0
        %1333 = vmatprep.subr.bf16.mxu0 0
        %1334 = vmatpush1.bf16.msra.mxu0 0
        %1335 = vmatprep.subr.bf16.mxu0 0
        %1336 = vmatpush1.bf16.msra.mxu0 0
        %1337 = vmatprep.subr.bf16.mxu0 0
        %1338 = vmatpush1.bf16.msra.mxu0 0
        %1339 = vmatprep.subr.bf16.mxu0 0
        %1340 = vmatpush1.bf16.msra.mxu0 0
        %1341 = vmatprep.subr.bf16.mxu0 0
        %1342 = vmatpush1.bf16.msra.mxu0 0
        %1343 = vmatprep.subr.bf16.mxu0 0
        %1344 = vmatpush1.bf16.msra.mxu0 0
        %1345 = vmatprep.subr.bf16.mxu0 0
        %1346 = vmatpush1.bf16.msra.mxu0 0
        %1347 = vmatprep.subr.bf16.mxu0 0
        %1348 = vmatpush1.bf16.msra.mxu0 0
        %1349 = vmatprep.subr.bf16.mxu0 0
        %1350 = vmatpush1.bf16.msra.mxu0 0
        %1351 = vmatprep.subr.bf16.mxu0 0
        %1352 = vmatpush1.bf16.msra.mxu0 0
        %1353 = vmatprep.subr.bf16.mxu0 0
        %1354 = vmatpush1.bf16.msra.mxu0 0
        %1355 = vmatprep.mubr.bf16.mxu0 0
        %1356 = vmatmul.mubr.bf16.gmra.mrb[0].mxu0 %v1318
        %v1357 = vpop.f32.mrb[0].mxu0
        %v1358 = vadd.f32 0.0, %v1357
        %v1359 = vpop.f32.mrb[0].mxu0
        %v1360 = vpop.f32.mrb[0].mxu0
        %v1361 = vpop.f32.mrb[0].mxu0
        %1362 = vdwg.mxu0
        %v1364 = vsel %vm910, %v1219, 0
        %v1367 = vsel %vm1227, %v1223, 0
        %1369 = vmatprep.subr.bf16.mxu0 0
        %1370 = vmatpush1.bf16.msra.mxu0 %v1367
        %1371 = vmatprep.subr.bf16.mxu0 0
        %1372 = vmatpush1.bf16.msra.mxu0 0
        %1373 = vmatprep.subr.bf16.mxu0 0
        %1374 = vmatpush1.bf16.msra.mxu0 0
        %1375 = vmatprep.subr.bf16.mxu0 0
        %1376 = vmatpush1.bf16.msra.mxu0 0
        %1377 = vmatprep.subr.bf16.mxu0 0
        %1378 = vmatpush1.bf16.msra.mxu0 0
        %1379 = vmatprep.subr.bf16.mxu0 0
        %1380 = vmatpush1.bf16.msra.mxu0 0
        %1381 = vmatprep.subr.bf16.mxu0 0
        %1382 = vmatpush1.bf16.msra.mxu0 0
        %1383 = vmatprep.subr.bf16.mxu0 0
        %1384 = vmatpush1.bf16.msra.mxu0 0
        %1385 = vmatprep.subr.bf16.mxu0 0
        %1386 = vmatpush1.bf16.msra.mxu0 0
        %1387 = vmatprep.subr.bf16.mxu0 0
        %1388 = vmatpush1.bf16.msra.mxu0 0
        %1389 = vmatprep.subr.bf16.mxu0 0
        %1390 = vmatpush1.bf16.msra.mxu0 0
        %1391 = vmatprep.subr.bf16.mxu0 0
        %1392 = vmatpush1.bf16.msra.mxu0 0
        %1393 = vmatprep.subr.bf16.mxu0 0
        %1394 = vmatpush1.bf16.msra.mxu0 0
        %1395 = vmatprep.subr.bf16.mxu0 0
        %1396 = vmatpush1.bf16.msra.mxu0 0
        %1397 = vmatprep.subr.bf16.mxu0 0
        %1398 = vmatpush1.bf16.msra.mxu0 0
        %1399 = vmatprep.subr.bf16.mxu0 0
        %1400 = vmatpush1.bf16.msra.mxu0 0
        %1401 = vmatprep.mubr.bf16.mxu0 0
        %1402 = vmatmul.mubr.bf16.gmra.mrb[0].mxu0 %v1364
        %v1403 = vpop.f32.mrb[0].mxu0
        %v1404 = vadd.f32 0.0, %v1403
        %v1405 = vpop.f32.mrb[0].mxu0
        %v1406 = vpop.f32.mrb[0].mxu0
        %v1407 = vpop.f32.mrb[0].mxu0
        %1408 = vdwg.mxu0
        %v1409 = vadd.f32 %v1212, %v1266
        %v1410 = vadd.f32 %v1213, %v1312
        %v1411 = vadd.f32 %v1214, %v1358
        %v1412 = vadd.f32 %v1215, %v1404
        %1413 = vst.msk [vmem:[#allocation5] sm:$0xff] %vm910, %v1409
        %1414 = vst.msk [vmem:[#allocation5 + $0x8] sm:$0xff] %vm910, %v1410
        %1415 = vst.msk [vmem:[#allocation5 + $0x10] sm:$0xff] %vm910, %v1411
        %1416 = vst.msk [vmem:[#allocation5 + $0x18] sm:$0xff] %vm910, %v1412
        %1417 = vst.msk [vmem:[#allocation3] sm:$0xff] %vm1183, %v1111
        %1418 = vst.msk [vmem:[#allocation3 + $0x8] sm:$0xff] %vm1183, %v1112
        %1419 = vst.msk [vmem:[#allocation3 + $0x10] sm:$0xff] %vm1183, %v1113
        %1420 = vst.msk [vmem:[#allocation3 + $0x18] sm:$0xff] %vm1183, %v1114
        %p1421 = scmp.eq.s32.totalorder %s31, 1
        // Predicated region
        $region147: #{tpu_custom_call.1} parent=133 // pred_check
          %p1422 = pneg %p1421
        $region148: #{tpu_custom_call.1} parent=133 // pred_check_branch
          %1424 = sbr.rel (%p1422) target = $region150
        $region149: #{tpu_custom_call.1} parent=133 // pred_region
          %v1425 = vld [vmem:[#allocation5] sm:$0xff]
          %v1426 = vld [vmem:[#allocation5 + $0x8] sm:$0xff]
          %v1427 = vld [vmem:[#allocation5 + $0x10] sm:$0xff]
          %v1428 = vld [vmem:[#allocation5 + $0x18] sm:$0xff]
          %v1429 = vld [vmem:[#allocation4] sm:$0xff]
          %v1430 = vld [vmem:[#allocation4 + $0x8] sm:$0xff]
          %v1431 = vld [vmem:[#allocation4 + $0x10] sm:$0xff]
          %v1432 = vld [vmem:[#allocation4 + $0x18] sm:$0xff]
          %v1433 = vrcp.pop %v1429
          %v1434 = vrcp.pop %v1430
          %v1435 = vrcp.pop %v1431
          %v1436 = vrcp.pop %v1432
          %1438 = vset.pattern.permute.xlu0 0
          %1439 = vperm.xlu0 %1438, %v1433
          %v1440 = vpop.permute.xlu0 %1439
          %1443 = vset.pattern.permute.xlu0 0
          %1444 = vperm.xlu0 %1443, %v1434
          %v1445 = vpop.permute.xlu0 %1444
          %1448 = vset.pattern.permute.xlu0 0
          %1449 = vperm.xlu0 %1448, %v1435
          %v1450 = vpop.permute.xlu0 %1449
          %1453 = vset.pattern.permute.xlu0 0
          %1454 = vperm.xlu0 %1453, %v1436
          %v1455 = vpop.permute.xlu0 %1454
          %v1457 = vmul.f32 %v1425, %v1440
          %v1458 = vmul.f32 %v1426, %v1445
          %v1459 = vmul.f32 %v1427, %v1450
          %v1460 = vmul.f32 %v1428, %v1455
          %v1461 = vpack.c.bf16 %v1457, %v1457
          %v1462 = vld [vmem:[%s8] sm:$0xf]
          %v1463 = vpack.c.bf16 %v1458, %v1458
          %s1464 = scalar_lea.vmem %s8, 4
          %v1465 = vld [vmem:[%s1464] sm:$0xf]
          %v1467 = vsel %vm910, %v1463, 0
          %v1470 = vsel %vm1227, %v1465, 0
          %1472 = vmatprep.subr.bf16.mxu0 0
          %1473 = vmatpush1.bf16.msra.mxu0 %v1470
          %1474 = vmatprep.subr.bf16.mxu0 0
          %1475 = vmatpush1.bf16.msra.mxu0 0
          %1476 = vmatprep.subr.bf16.mxu0 0
          %1477 = vmatpush1.bf16.msra.mxu0 0
          %1478 = vmatprep.subr.bf16.mxu0 0
          %1479 = vmatpush1.bf16.msra.mxu0 0
          %1480 = vmatprep.subr.bf16.mxu0 0
          %1481 = vmatpush1.bf16.msra.mxu0 0
          %1482 = vmatprep.subr.bf16.mxu0 0
          %1483 = vmatpush1.bf16.msra.mxu0 0
          %1484 = vmatprep.subr.bf16.mxu0 0
          %1485 = vmatpush1.bf16.msra.mxu0 0
          %1486 = vmatprep.subr.bf16.mxu0 0
          %1487 = vmatpush1.bf16.msra.mxu0 0
          %1488 = vmatprep.subr.bf16.mxu0 0
          %1489 = vmatpush1.bf16.msra.mxu0 0
          %1490 = vmatprep.subr.bf16.mxu0 0
          %1491 = vmatpush1.bf16.msra.mxu0 0
          %1492 = vmatprep.subr.bf16.mxu0 0
          %1493 = vmatpush1.bf16.msra.mxu0 0
          %1494 = vmatprep.subr.bf16.mxu0 0
          %1495 = vmatpush1.bf16.msra.mxu0 0
          %1496 = vmatprep.subr.bf16.mxu0 0
          %1497 = vmatpush1.bf16.msra.mxu0 0
          %1498 = vmatprep.subr.bf16.mxu0 0
          %1499 = vmatpush1.bf16.msra.mxu0 0
          %1500 = vmatprep.subr.bf16.mxu0 0
          %1501 = vmatpush1.bf16.msra.mxu0 0
          %1502 = vmatprep.subr.bf16.mxu0 0
          %1503 = vmatpush1.bf16.msra.mxu0 0
          %1504 = vmatprep.mubr.bf16.mxu0 0
          %1505 = vmatmul.mubr.bf16.gmra.mrb[0].mxu0 %v1467
          %v1506 = vpop.f32.mrb[0].mxu0
          %v1507 = vadd.f32 0.0, %v1506
          %v1508 = vpop.f32.mrb[0].mxu0
          %v1509 = vpop.f32.mrb[0].mxu0
          %v1510 = vpop.f32.mrb[0].mxu0
          %1511 = vdwg.mxu0
          %v1513 = vsel %vm910, %v1461, 0
          %v1516 = vsel %vm1227, %v1462, 0
          %1518 = vmatprep.subr.bf16.mxu0 0
          %1519 = vmatpush1.bf16.msra.mxu0 %v1516
          %1520 = vmatprep.subr.bf16.mxu0 0
          %1521 = vmatpush1.bf16.msra.mxu0 0
          %1522 = vmatprep.subr.bf16.mxu0 0
          %1523 = vmatpush1.bf16.msra.mxu0 0
          %1524 = vmatprep.subr.bf16.mxu0 0
          %1525 = vmatpush1.bf16.msra.mxu0 0
          %1526 = vmatprep.subr.bf16.mxu0 0
          %1527 = vmatpush1.bf16.msra.mxu0 0
          %1528 = vmatprep.subr.bf16.mxu0 0
          %1529 = vmatpush1.bf16.msra.mxu0 0
          %1530 = vmatprep.subr.bf16.mxu0 0
          %1531 = vmatpush1.bf16.msra.mxu0 0
          %1532 = vmatprep.subr.bf16.mxu0 0
          %1533 = vmatpush1.bf16.msra.mxu0 0
          %1534 = vmatprep.subr.bf16.mxu0 0
          %1535 = vmatpush1.bf16.msra.mxu0 0
          %1536 = vmatprep.subr.bf16.mxu0 0
          %1537 = vmatpush1.bf16.msra.mxu0 0
          %1538 = vmatprep.subr.bf16.mxu0 0
          %1539 = vmatpush1.bf16.msra.mxu0 0
          %1540 = vmatprep.subr.bf16.mxu0 0
          %1541 = vmatpush1.bf16.msra.mxu0 0
          %1542 = vmatprep.subr.bf16.mxu0 0
          %1543 = vmatpush1.bf16.msra.mxu0 0
          %1544 = vmatprep.subr.bf16.mxu0 0
          %1545 = vmatpush1.bf16.msra.mxu0 0
          %1546 = vmatprep.subr.bf16.mxu0 0
          %1547 = vmatpush1.bf16.msra.mxu0 0
          %1548 = vmatprep.subr.bf16.mxu0 0
          %1549 = vmatpush1.bf16.msra.mxu0 0
          %1550 = vmatprep.mubr.bf16.mxu0 0
          %1551 = vmatmul.mubr.bf16.gmra.mrb[0].mxu0 %v1513
          %v1552 = vpop.f32.mrb[0].mxu0
          %v1553 = vadd.f32 %v1507, %v1552
          %v1554 = vpop.f32.mrb[0].mxu0
          %v1555 = vpop.f32.mrb[0].mxu0
          %v1556 = vpop.f32.mrb[0].mxu0
          %1557 = vdwg.mxu0
          %v1558 = vpack.c.bf16 %v1459, %v1459
          %s1559 = scalar_lea.vmem %s8, 8
          %v1560 = vld [vmem:[%s1559] sm:$0xf]
          %v1562 = vsel %vm910, %v1558, 0
          %v1565 = vsel %vm1227, %v1560, 0
          %1567 = vmatprep.subr.bf16.mxu0 0
          %1568 = vmatpush1.bf16.msra.mxu0 %v1565
          %1569 = vmatprep.subr.bf16.mxu0 0
          %1570 = vmatpush1.bf16.msra.mxu0 0
          %1571 = vmatprep.subr.bf16.mxu0 0
          %1572 = vmatpush1.bf16.msra.mxu0 0
          %1573 = vmatprep.subr.bf16.mxu0 0
          %1574 = vmatpush1.bf16.msra.mxu0 0
          %1575 = vmatprep.subr.bf16.mxu0 0
          %1576 = vmatpush1.bf16.msra.mxu0 0
          %1577 = vmatprep.subr.bf16.mxu0 0
          %1578 = vmatpush1.bf16.msra.mxu0 0
          %1579 = vmatprep.subr.bf16.mxu0 0
          %1580 = vmatpush1.bf16.msra.mxu0 0
          %1581 = vmatprep.subr.bf16.mxu0 0
          %1582 = vmatpush1.bf16.msra.mxu0 0
          %1583 = vmatprep.subr.bf16.mxu0 0
          %1584 = vmatpush1.bf16.msra.mxu0 0
          %1585 = vmatprep.subr.bf16.mxu0 0
          %1586 = vmatpush1.bf16.msra.mxu0 0
          %1587 = vmatprep.subr.bf16.mxu0 0
          %1588 = vmatpush1.bf16.msra.mxu0 0
          %1589 = vmatprep.subr.bf16.mxu0 0
          %1590 = vmatpush1.bf16.msra.mxu0 0
          %1591 = vmatprep.subr.bf16.mxu0 0
          %1592 = vmatpush1.bf16.msra.mxu0 0
          %1593 = vmatprep.subr.bf16.mxu0 0
          %1594 = vmatpush1.bf16.msra.mxu0 0
          %1595 = vmatprep.subr.bf16.mxu0 0
          %1596 = vmatpush1.bf16.msra.mxu0 0
          %1597 = vmatprep.subr.bf16.mxu0 0
          %1598 = vmatpush1.bf16.msra.mxu0 0
          %1599 = vmatprep.mubr.bf16.mxu0 0
          %1600 = vmatmul.mubr.bf16.gmra.mrb[0].mxu0 %v1562
          %v1601 = vpop.f32.mrb[0].mxu0
          %v1602 = vadd.f32 0.0, %v1601
          %v1603 = vpop.f32.mrb[0].mxu0
          %v1604 = vpop.f32.mrb[0].mxu0
          %v1605 = vpop.f32.mrb[0].mxu0
          %1606 = vdwg.mxu0
          %v1607 = vadd.f32 %v1553, %v1602
          %v1608 = vpack.c.bf16 %v1460, %v1460
          %s1609 = scalar_lea.vmem %s8, 12
          %v1610 = vld [vmem:[%s1609] sm:$0xf]
          %v1612 = vsel %vm910, %v1608, 0
          %v1615 = vsel %vm1227, %v1610, 0
          %1617 = vmatprep.subr.bf16.mxu0 0
          %1618 = vmatpush1.bf16.msra.mxu0 %v1615
          %1619 = vmatprep.subr.bf16.mxu0 0
          %1620 = vmatpush1.bf16.msra.mxu0 0
          %1621 = vmatprep.subr.bf16.mxu0 0
          %1622 = vmatpush1.bf16.msra.mxu0 0
          %1623 = vmatprep.subr.bf16.mxu0 0
          %1624 = vmatpush1.bf16.msra.mxu0 0
          %1625 = vmatprep.subr.bf16.mxu0 0
          %1626 = vmatpush1.bf16.msra.mxu0 0
          %1627 = vmatprep.subr.bf16.mxu0 0
          %1628 = vmatpush1.bf16.msra.mxu0 0
          %1629 = vmatprep.subr.bf16.mxu0 0
          %1630 = vmatpush1.bf16.msra.mxu0 0
          %1631 = vmatprep.subr.bf16.mxu0 0
          %1632 = vmatpush1.bf16.msra.mxu0 0
          %1633 = vmatprep.subr.bf16.mxu0 0
          %1634 = vmatpush1.bf16.msra.mxu0 0
          %1635 = vmatprep.subr.bf16.mxu0 0
          %1636 = vmatpush1.bf16.msra.mxu0 0
          %1637 = vmatprep.subr.bf16.mxu0 0
          %1638 = vmatpush1.bf16.msra.mxu0 0
          %1639 = vmatprep.subr.bf16.mxu0 0
          %1640 = vmatpush1.bf16.msra.mxu0 0
          %1641 = vmatprep.subr.bf16.mxu0 0
          %1642 = vmatpush1.bf16.msra.mxu0 0
          %1643 = vmatprep.subr.bf16.mxu0 0
          %1644 = vmatpush1.bf16.msra.mxu0 0
          %1645 = vmatprep.subr.bf16.mxu0 0
          %1646 = vmatpush1.bf16.msra.mxu0 0
          %1647 = vmatprep.subr.bf16.mxu0 0
          %1648 = vmatpush1.bf16.msra.mxu0 0
          %1649 = vmatprep.mubr.bf16.mxu0 0
          %1650 = vmatmul.mubr.bf16.gmra.mrb[0].mxu0 %v1612
          %v1651 = vpop.f32.mrb[0].mxu0
          %v1652 = vadd.f32 0.0, %v1651
          %v1653 = vpop.f32.mrb[0].mxu0
          %v1654 = vpop.f32.mrb[0].mxu0
          %v1655 = vpop.f32.mrb[0].mxu0
          %1656 = vdwg.mxu0
          %v1657 = vadd.f32 %v1607, %v1652
          %v1658 = vld [vmem:[%s9] sm:$0x1]
          %v1660 = vlaneseq
          %v1661 = vshrl.u32 %v1660, 7
          %v1662 = vsub.s32 0, %v1661
          %v1663 = vrot.slane %v1658, %v1662
          %v1665 = vadd.f32 %v1657, %v1663
          %v1666 = vld [vmem:[%s556] sm:$0xff]
          %v1667 = vlaneseq
          %v1668 = vshrl.u32 %v1667, 7
          %v1669 = vsub.s32 2, %v1668
          %v1670 = vrot.slane %v562, %v1669
          %v1671 = vmul.f32 %v1670, %v1665
          %v1672 = vadd.f32 %v1666, %v1671
          %vm1673 = vcmask 261120
          %1674 = vst.msk [vmem:[%s548] sm:$0xff] %vm1673, %v1672
        $region150: #{tpu_custom_call.1} parent=133 // pred_fallthru
          _
        %s1675 = sand.u32 %s289, 1
        %s1676 = scalar_lea.sflag [#allocation9], %s1675
        %s1677 = sand.u32 %s289, 1
        %s1678 = smul.addr %s1677, 8
        %s1679 = scalar_lea.vmem [#allocation8], %s1678
        // Predicated region
        $region151: #{tpu_custom_call.1} parent=133 // pred_check
          %p1680 = pneg %p299
        $region152: #{tpu_custom_call.1} parent=133 // pred_check_branch
          %1682 = sbr.rel (%p1680) target = $region154
        $region153: #{tpu_custom_call.1} parent=133 // pred_region
          %s1684 = ssub.s32 128, 128
          %1685 = vsyncadd %s1676, %s1684
          %s1686 = smul.addr %s29, 2
          %s1687 = sadd.s32 %s30, %s1686
          %s1688 = smul.addr %s1687, 128
          %s1689 = scalar_lea.hbm %s10, %s1688
          %s1691 = sshll.u32 %s1679, 4
          %s1692 = int_to_ptr.vmem [resolvable:$true] %s1691
          %1694 = dma.vmem_to_hbm [thread:$0]  %s1692, 128, %s1689, %s1676
        $region154: #{tpu_custom_call.1} parent=133 // pred_fallthru
          _
      $region134: #{tpu_custom_call.1} parent=5 // pred_fallthru
        _
      %p1695 = scmp.le.s32.totalorder 2, %s19
      // Predicated region
      $region155: #{tpu_custom_call.1} parent=5 // pred_check
        %p1696 = pneg %p1695
      $region156: #{tpu_custom_call.1} parent=5 // pred_check_branch
        %1698 = sbr.rel (%p1696) target = $region158
      $region157: #{tpu_custom_call.1} parent=5 // pred_region
        %s1699 = ssub.s32 %s19, 2
        // Predicated region
        $region159: #{tpu_custom_call.1} parent=157 // pred_check
          %p1700 = pneg %p305
        $region160: #{tpu_custom_call.1} parent=157 // pred_check_branch
          %1702 = sbr.rel (%p1700) target = $region162
        $region161: #{tpu_custom_call.1} parent=157 // pred_region
          %s1703 = sand.u32 %s290, 1
          %s1704 = scalar_lea.sflag [#allocation9], %s1703
          %s1705 = sand.u32 %s290, 1
          %s1706 = smul.addr %s1705, 8
          %s1707 = scalar_lea.vmem [#allocation8], %s1706
          %1708 = dma.done %s1704, 128
        $region162: #{tpu_custom_call.1} parent=157 // pred_fallthru
          _
      $region158: #{tpu_custom_call.1} parent=5 // pred_fallthru
        _
    $region6: #{tpu_custom_call.1} parent=1 // loop_footer
      %s23 = sadd.s32 1, %s19
    $region7: #{tpu_custom_call.1} parent=1 // loop_footer_branch
      %18 = sbr.rel target = $region3
    $region8: #{tpu_custom_call.1} parent=1 // loop_exit
      _
    %1709 = vsyncpa [#allocation9], 1
    %s1710 = scalar_lea.sflag [#allocation9], 1
    %1711 = vsyncpa %s1710, 1

</llo_original>
